<compile_context>
chip_gen: v7x
topology: tpu7x:2x2x1
jax: 0.10.0
libtpu: 0.0.40
codegen_flags: <defaults>
</compile_context>

<pallas_src>
import numpy as np
import jax
import jax.numpy as jnp
from jax.experimental import pallas as pl
from jax.experimental.pallas import tpu as pltpu

ALPHA = 0.5
BETA = 0.5
GAMMA = 0.05
EPSILON = 1e-6

_TARGET_TILE_ROWS = 1024          # rows per grid step (review: 512-2048)
_PER_BUFFER_BYTES = 6 << 20       # ~6 MiB/pipeline buffer → 4 buffers ≈ 24 MiB (fits v7x 64 MiB VMEM)
_VMEM_LIMIT_BYTES = 48 << 20      # explicit scoped-VMEM limit (defaults: 16 MiB v5e / 32 MiB v6e,v7x)


# ---------------------------------------------------------------------------
# Streaming kernel: spectrogram L1 (+ fused mel-L1 / param-MSE on step 0).
# ---------------------------------------------------------------------------
def _make_spec_kernel(total_rows, tile_rows, num_inner, f_rows, fuse_aux):
    needs_mask = (total_rows % tile_rows) != 0

    def body(o_ref, t_ref, fb_ref, pred_ref, tparam_ref, out_ref, acc_ref):
        s = pl.program_id(0)   # row-split axis ("parallel": shards across TCs on v7x)
        i = pl.program_id(1)   # streaming/reduction axis ("arbitrary")

        @pl.when(i == 0)
        def _():
            out_ref[...] = jnp.zeros_like(out_ref)
            acc_ref[...] = jnp.zeros_like(acc_ref)

        # In-kernel upcast + clamp (no wrapper-side HBM-writing cast).
        o = jnp.maximum(o_ref[...].astype(jnp.float32), EPSILON)
        t = jnp.maximum(t_ref[...].astype(jnp.float32), EPSILON)
        diff = o - t
        ad = jnp.abs(diff)

        if needs_mask:
            # Keep the select (NOT multiply-by-mask): padded rows of the last
            # tile may contain garbage/NaN, which a select safely discards.
            tile_idx = s * num_inner + i
            rows = tile_idx * tile_rows + jax.lax.broadcasted_iota(jnp.int32, ad.shape, 0)
            ad = jnp.where(rows < total_rows, ad, 0.0)

        # (1, T) lane-parallel running sums; sublane reduce rides the idle XLU.
        acc_ref[...] += jnp.sum(ad, axis=0, keepdims=True)

        if fuse_aux:
            # spec[0, 0] == rows 0..F-1 of the first tile, already in VMEM:
            # fused mel-L1 (bf16 MXU, fb @ (o - t)) + parameter MSE hide under
            # the streaming DMA of grid step 0.
            @pl.when(jnp.logical_and(s == 0, i == 0))
            def _():
                d16 = diff[:f_rows, :].astype(jnp.bfloat16)
                fb16 = fb_ref[...].astype(jnp.bfloat16)
                mel_d = jnp.dot(fb16, d16, preferred_element_type=jnp.float32)
                out_ref[0:1, 1:2, :] = jnp.full(
                    (1, 1, 128), jnp.mean(jnp.abs(mel_d)), jnp.float32)
                pd = (pred_ref[...].astype(jnp.float32)
                      - tparam_ref[...].astype(jnp.float32))
                out_ref[0:1, 2:3, :] = jnp.full(
                    (1, 1, 128), jnp.mean(pd * pd), jnp.float32)

        @pl.when(i == num_inner - 1)
        def _():
            out_ref[0:1, 0:1, :] = jnp.full(
                (1, 1, 128), jnp.sum(acc_ref[...]), jnp.float32)

    if fuse_aux:
        return body

    def body_nofuse(o_ref, t_ref, out_ref, acc_ref):
        return body(o_ref, t_ref, None, None, None, out_ref, acc_ref)

    return body_nofuse


# ---------------------------------------------------------------------------
# Fallback aux kernel (only used when tile_rows < F): mel-L1 + param MSE.
# Reads spec[0, 0] straight out of the 4-D arrays via squeezed BlockSpecs
# (no wrapper-side [0, 0] slice materialization).
# ---------------------------------------------------------------------------
def _aux_kernel(o00_ref, t00_ref, fb_ref, pred_ref, tparam_ref, out_ref):
    o = jnp.maximum(o00_ref[...].astype(jnp.float32), EPSILON)
    t = jnp.maximum(t00_ref[...].astype(jnp.float32), EPSILON)
    d16 = (o - t).astype(jnp.bfloat16)
    mel_d = jnp.dot(fb_ref[...].astype(jnp.bfloat16), d16,
                    preferred_element_type=jnp.float32)
    out_ref[0] = jnp.mean(jnp.abs(mel_d))
    pd = pred_ref[...].astype(jnp.float32) - tparam_ref[...].astype(jnp.float32)
    out_ref[1] = jnp.mean(pd * pd)


# ---------------------------------------------------------------------------
# Helpers / wrapper
# ---------------------------------------------------------------------------
def _choose_tile_rows(n_rows, n_cols, itemsize):
    """Largest row tile that keeps each pipeline buffer under ~6 MiB."""
    budget_rows = max(1, _PER_BUFFER_BYTES // (itemsize * n_cols))
    target = min(_TARGET_TILE_ROWS, budget_rows)
    # Round to a multiple of 32 (covers f32/bf16/int8 sublane tiling).
    target = max(32, (target // 32) * 32)
    if n_rows <= target:
        return n_rows  # full extent is always a legal block shape
    return target


def _choose_splits(num_tiles):
    # 2-way split targets v7x's 2 TensorCores via the "parallel" grid axis; on
    # single-TC v5e/v6e it just runs sequentially (negligible overhead).
    if num_tiles >= 2 and num_tiles % 2 == 0:
        return 2
    return 1


def make_mel_filterbank(n_mels, n_freq, sr):
    """Deterministic triangular (HTK-mel) filterbank, shape [n_mels, n_freq]."""
    f_max = sr / 2.0

    def hz_to_mel(f):
        return 2595.0 * np.log10(1.0 + f / 700.0)

    def mel_to_hz(m):
        return 700.0 * (10.0 ** (m / 2595.0) - 1.0)

    mel_pts = np.linspace(hz_to_mel(0.0), hz_to_mel(f_max), n_mels + 2)
    hz_pts = mel_to_hz(mel_pts)
    bins = np.floor((n_freq - 1) * hz_pts / f_max).astype(np.int64)

    fb = np.zeros((n_mels, n_freq), dtype=np.float32)
    for m in range(1, n_mels + 1):
        l, c, r = bins[m - 1], bins[m], bins[m + 1]
        for k in range(l, c):
            if c > l:
                fb[m - 1, k] = (k - l) / float(c - l)
        for k in range(c, r):
            if r > c:
                fb[m - 1, k] = (r - k) / float(r - c)
    return jnp.asarray(fb)


def audio_mastering_loss(output_spec, target_spec, predicted_params, target_params, mel_fb):
    """Pallas implementation of AudioMasteringLoss.forward → (total, metrics)."""
    B, C, F, T = output_spec.shape
    R = B * C * F
    count = B * C * F * T

    # Metadata-only reshape; NO dtype cast in the wrapper.
    out_flat = output_spec.reshape(R, T)
    tgt_flat = target_spec.reshape(R, T)
    # TODO(synk): if T is not a multiple of 128 (ragged STFT frame counts), a
    # lane-dense re-flattening would recover streaming bandwidth; kept simple here.

    tile_rows = _choose_tile_rows(R, T, output_spec.dtype.itemsize)
    num_tiles = -(-R // tile_rows)
    num_splits = _choose_splits(num_tiles)
    num_inner = num_tiles // num_splits

    fuse_aux = tile_rows >= F  # spec[0,0] fully contained in the first tile

    kernel = _make_spec_kernel(R, tile_rows, num_inner, F, fuse_aux)

    row_spec = pl.BlockSpec((tile_rows, T),
                            lambda s, i, _ni=num_inner: (s * _ni + i, 0))
    in_specs = [row_spec, row_spec]
    args = [out_flat, tgt_flat]
    if fuse_aux:
        in_specs += [
            pl.BlockSpec(mel_fb.shape, lambda s, i: (0, 0)),            # VMEM-resident
            pl.BlockSpec(predicted_params.shape, lambda s, i: (0, 0)),  # VMEM-resident
            pl.BlockSpec(target_params.shape, lambda s, i: (0, 0)),     # VMEM-resident
        ]
        args += [mel_fb, predicted_params, target_params]

    out = pl.pallas_call(
        kernel,
        out_shape=jax.ShapeDtypeStruct((num_splits, 8, 128), jnp.float32),
        grid_spec=pltpu.PrefetchScalarGridSpec(
            num_scalar_prefetch=0,
            grid=(num_splits, num_inner),
            in_specs=in_specs,
            # Output partitioned along the parallel split axis; resident across
            # the reduction axis (row 0 = partial L1 sum, rows 1/2 = aux scalars).
            out_specs=pl.BlockSpec((1, 8, 128), lambda s, i: (s, 0, 0)),
            scratch_shapes=[pltpu.VMEM((1, T), jnp.float32)],
        ),
        compiler_params=pltpu.CompilerParams(
            dimension_semantics=("parallel", "arbitrary"),
            vmem_limit_bytes=_VMEM_LIMIT_BYTES,
        ),
    )(*args)

    spec_l1 = jnp.sum(out[:, 0, 0]) / count

    if fuse_aux:
        perceptual = out[0, 1, 0]
        param_loss = out[0, 2, 0]
    else:
        aux = pl.pallas_call(
            _aux_kernel,
            out_shape=jax.ShapeDtypeStruct((2,), jnp.float32),
            grid=(1,),
            in_specs=[
                pl.BlockSpec((pl.Squeezed(), pl.Squeezed(), F, T),
                             lambda i: (0, 0, 0, 0)),
                pl.BlockSpec((pl.Squeezed(), pl.Squeezed(), F, T),
                             lambda i: (0, 0, 0, 0)),
                pl.BlockSpec(mel_fb.shape, lambda i: (0, 0)),
                pl.BlockSpec(predicted_params.shape, lambda i: (0, 0)),
                pl.BlockSpec(target_params.shape, lambda i: (0, 0)),
            ],
            out_specs=pl.BlockSpec(memory_space=pltpu.MemorySpace.SMEM),
        )(output_spec, target_spec, mel_fb, predicted_params, target_params)
        perceptual = aux[0]
        param_loss = aux[1]

    total = ALPHA * spec_l1 + BETA * param_loss + GAMMA * perceptual
    metrics = {
        "spec_loss_l1": spec_l1,
        "parameter_loss": param_loss,
        "perceptual_loss": perceptual,
        "total_loss": total,
    }
    return total, metrics


def _reference(output_spec, target_spec, predicted_params, target_params, mel_fb):
    """Pure-JAX reference for correctness checking."""
    o = jnp.maximum(output_spec.astype(jnp.float32), EPSILON)
    t = jnp.maximum(target_spec.astype(jnp.float32), EPSILON)
    spec_l1 = jnp.mean(jnp.abs(o - t))
    param_loss = jnp.mean((predicted_params.astype(jnp.float32)
                           - target_params.astype(jnp.float32)) ** 2)
    mel_out = mel_fb @ o[0, 0]
    mel_tgt = mel_fb @ t[0, 0]
    perceptual = jnp.mean(jnp.abs(mel_out - mel_tgt))
    total = ALPHA * spec_l1 + BETA * param_loss + GAMMA * perceptual
    return total, spec_l1, param_loss, perceptual


if __name__ == "__main__":
    # Small shapes consistent with the module's forward:
    #   spectrograms [B, C, F, T], mastering parameters [B, P]
    B, C, F, T = 2, 2, 128, 256
    P = 10
    N_MELS = 64
    SR = 44100

    key = jax.random.PRNGKey(0)
    k1, k2, k3, k4 = jax.random.split(key, 4)
    output_spec = jax.random.uniform(k1, (B, C, F, T), dtype=jnp.float32)
    target_spec = jax.random.uniform(k2, (B, C, F, T), dtype=jnp.float32)
    predicted_params = jax.random.normal(k3, (B, P), dtype=jnp.float32)
    target_params = jax.random.normal(k4, (B, P), dtype=jnp.float32)

    mel_fb = make_mel_filterbank(N_MELS, F, SR)

    total, metrics = audio_mastering_loss(
        output_spec, target_spec, predicted_params, target_params, mel_fb)
    total = jax.block_until_ready(total)

    ref_total, ref_spec, ref_param, ref_perc = _reference(
        output_spec, target_spec, predicted_params, target_params, mel_fb)

    checks = [
        ("spec_loss_l1", metrics["spec_loss_l1"], ref_spec, 1e-4),
        ("parameter_loss", metrics["parameter_loss"], ref_param, 1e-5),
        ("perceptual_loss", metrics["perceptual_loss"], ref_perc, 3e-2),  # bf16 MXU matmul
        ("total_loss", total, ref_total, 5e-3),
    ]
    for name, got, want, rtol in checks:
        if not np.allclose(np.asarray(got), np.asarray(want), rtol=rtol, atol=1e-5):
            raise AssertionError(
                f"{name} mismatch: kernel={float(got)} ref={float(want)}")

    print("KERNEL_OK")
</pallas_src>

<mosaic_0001>
module attributes {stable_mosaic.version = 11 : i64} {
  func.func @body(%arg0: i32, %arg1: i32, %arg2: memref<512x256xf32, #tpu.memory_space<vmem>>, %arg3: memref<512x256xf32, #tpu.memory_space<vmem>>, %arg4: memref<64x128xf32, #tpu.memory_space<vmem>>, %arg5: memref<2x10xf32, #tpu.memory_space<vmem>>, %arg6: memref<2x10xf32, #tpu.memory_space<vmem>>, %arg7: memref<1x8x128xf32, #tpu.memory_space<vmem>>, %arg8: memref<1x256xf32, #tpu.memory_space<vmem>>) attributes {dimension_semantics = [#tpu.dimension_semantics<parallel>, #tpu.dimension_semantics<arbitrary>], iteration_bounds = array<i64: 1, 1>, scalar_prefetch = 0 : i64, scratch_operands = 1 : i64, tpu.core_type = #tpu.core_type<tc>, window_params = [{transform_indices = @transform_0, window_bounds = array<i64: 512, 256>}, {transform_indices = @transform_1, window_bounds = array<i64: 512, 256>}, {pipeline_mode = #tpu.pipeline_mode<synchronous>, transform_indices = @transform_2, window_bounds = array<i64: 64, 128>}, {pipeline_mode = #tpu.pipeline_mode<synchronous>, transform_indices = @transform_3, window_bounds = array<i64: 2, 10>}, {pipeline_mode = #tpu.pipeline_mode<synchronous>, transform_indices = @transform_4, window_bounds = array<i64: 2, 10>}, {transform_indices = @transform_5, window_bounds = array<i64: 1, 8, 128>}]} {
    %c0_i32 = arith.constant 0 : i32
    %0 = arith.cmpi eq, %arg1, %c0_i32 : i32
    %1 = arith.extui %0 : i1 to i32
    %c0_i32_0 = arith.constant 0 : i32
    %2 = arith.cmpi ne, %1, %c0_i32_0 : i32
    scf.if %2 {
      %cst_15 = arith.constant 0.000000e+00 : f32
      %24 = vector.broadcast %cst_15 : f32 to vector<1x8x128xf32>
      %c0_16 = arith.constant 0 : index
      %c0_17 = arith.constant 0 : index
      %c0_18 = arith.constant 0 : index
      %25 = vector.load %arg7[%c0_16, %c0_17, %c0_18] : memref<1x8x128xf32, #tpu.memory_space<vmem>>, vector<1x8x128xf32>
      tpu.vector_store %arg7[%c0_16, %c0_17, %c0_18], %24 {strides = array<i32>} : memref<1x8x128xf32, #tpu.memory_space<vmem>>, vector<1x8x128xf32>,
      %cst_19 = arith.constant 0.000000e+00 : f32
      %26 = vector.broadcast %cst_19 : f32 to vector<1x256xf32>
      %c0_20 = arith.constant 0 : index
      %c0_21 = arith.constant 0 : index
      %27 = vector.load %arg8[%c0_20, %c0_21] : memref<1x256xf32, #tpu.memory_space<vmem>>, vector<1x256xf32>
      tpu.vector_store %arg8[%c0_20, %c0_21], %26 {strides = array<i32>} : memref<1x256xf32, #tpu.memory_space<vmem>>, vector<1x256xf32>,
    } else {
    }
    %c0 = arith.constant 0 : index
    %c0_1 = arith.constant 0 : index
    %3 = vector.load %arg2[%c0, %c0_1] : memref<512x256xf32, #tpu.memory_space<vmem>>, vector<512x256xf32>
    %cst = arith.constant 9.99999997E-7 : f32
    %4 = vector.broadcast %cst : f32 to vector<512x256xf32>
    %5 = arith.maximumf %3, %4 : vector<512x256xf32>
    %c0_2 = arith.constant 0 : index
    %c0_3 = arith.constant 0 : index
    %6 = vector.load %arg3[%c0_2, %c0_3] : memref<512x256xf32, #tpu.memory_space<vmem>>, vector<512x256xf32>
    %cst_4 = arith.constant 9.99999997E-7 : f32
    %7 = vector.broadcast %cst_4 : f32 to vector<512x256xf32>
    %8 = arith.maximumf %6, %7 : vector<512x256xf32>
    %9 = arith.subf %5, %8 : vector<512x256xf32>
    %10 = math.absf %9 : vector<512x256xf32>
    %c0_5 = arith.constant 0 : index
    %c0_6 = arith.constant 0 : index
    %11 = vector.load %arg8[%c0_5, %c0_6] : memref<1x256xf32, #tpu.memory_space<vmem>>, vector<1x256xf32>
    %cst_7 = arith.constant dense<0.000000e+00> : vector<256xf32>
    %12 = vector.multi_reduction <add>, %10, %cst_7 [0] : vector<512x256xf32> to vector<256xf32>
    %13 = vector.shape_cast %12 : vector<256xf32> to vector<1x256xf32>
    %14 = arith.addf %11, %13 : vector<1x256xf32>
    %c0_8 = arith.constant 0 : index
    %c0_9 = arith.constant 0 : index
    %15 = vector.load %arg8[%c0_8, %c0_9] : memref<1x256xf32, #tpu.memory_space<vmem>>, vector<1x256xf32>
    tpu.vector_store %arg8[%c0_8, %c0_9], %14 {strides = array<i32>} : memref<1x256xf32, #tpu.memory_space<vmem>>, vector<1x256xf32>,
    %c0_i32_10 = arith.constant 0 : i32
    %16 = arith.cmpi eq, %arg0, %c0_i32_10 : i32
    %c0_i32_11 = arith.constant 0 : i32
    %17 = arith.cmpi eq, %arg1, %c0_i32_11 : i32
    %18 = arith.andi %16, %17 : i1
    %19 = arith.extui %18 : i1 to i32
    %c0_i32_12 = arith.constant 0 : i32
    %20 = arith.cmpi ne, %19, %c0_i32_12 : i32
    scf.if %20 {
      %24 = vector.extract_strided_slice %9 {offsets = [0, 0], sizes = [128, 256], strides = [1, 1]} : vector<512x256xf32> to vector<128x256xf32>
      %25 = arith.truncf %24 : vector<128x256xf32> to vector<128x256xbf16>
      %c0_15 = arith.constant 0 : index
      %c0_16 = arith.constant 0 : index
      %26 = vector.load %arg4[%c0_15, %c0_16] : memref<64x128xf32, #tpu.memory_space<vmem>>, vector<64x128xf32>
      %27 = arith.truncf %26 : vector<64x128xf32> to vector<64x128xbf16>
      %cst_17 = arith.constant dense<0.000000e+00> : vector<64x256xf32>
      %28 = tpu.matmul %27, %25, %cst_17 {dimension_numbers = #tpu.dot_dimension_numbers<[1], [0], [0], [1], [0, 0, 1, 1], [], []>} : vector<64x128xbf16>, vector<128x256xbf16>, vector<64x256xf32> -> vector<64x256xf32>
      %29 = math.absf %28 : vector<64x256xf32>
      %30 = vector.shape_cast %29 : vector<64x256xf32> to vector<1x64x256xf32>
      %cst_18 = arith.constant dense<0.000000e+00> : vector<1xf32>
      %31 = vector.multi_reduction <add>, %30, %cst_18 [1, 2] : vector<1x64x256xf32> to vector<1xf32>
      %32 = vector.shape_cast %31 : vector<1xf32> to vector<1x1x1xf32>
      %33 = vector.extract %32[0, 0, 0] : f32 from vector<1x1x1xf32>
      %cst_19 = arith.constant 1.638400e+04 : f32
      %34 = arith.divf %33, %cst_19 : f32
      %35 = vector.broadcast %34 : f32 to vector<1x1x128xf32>
      %c0_20 = arith.constant 0 : index
      %c1 = arith.constant 1 : index
      %c0_21 = arith.constant 0 : index
      %36 = vector.load %arg7[%c0_20, %c1, %c0_21] : memref<1x8x128xf32, #tpu.memory_space<vmem>>, vector<1x1x128xf32>
      tpu.vector_store %arg7[%c0_20, %c1, %c0_21], %35 {strides = array<i32>} : memref<1x8x128xf32, #tpu.memory_space<vmem>>, vector<1x1x128xf32>,
      %c0_22 = arith.constant 0 : index
      %c0_23 = arith.constant 0 : index
      %37 = vector.load %arg5[%c0_22, %c0_23] : memref<2x10xf32, #tpu.memory_space<vmem>>, vector<2x10xf32>
      %c0_24 = arith.constant 0 : index
      %c0_25 = arith.constant 0 : index
      %38 = vector.load %arg6[%c0_24, %c0_25] : memref<2x10xf32, #tpu.memory_space<vmem>>, vector<2x10xf32>
      %39 = arith.subf %37, %38 : vector<2x10xf32>
      %40 = arith.mulf %39, %39 : vector<2x10xf32>
      %41 = vector.shape_cast %40 : vector<2x10xf32> to vector<1x2x10xf32>
      %cst_26 = arith.constant dense<0.000000e+00> : vector<1xf32>
      %42 = vector.multi_reduction <add>, %41, %cst_26 [1, 2] : vector<1x2x10xf32> to vector<1xf32>
      %43 = vector.shape_cast %42 : vector<1xf32> to vector<1x1x1xf32>
      %44 = vector.extract %43[0, 0, 0] : f32 from vector<1x1x1xf32>
      %cst_27 = arith.constant 2.000000e+01 : f32
      %45 = arith.divf %44, %cst_27 : f32
      %46 = vector.broadcast %45 : f32 to vector<1x1x128xf32>
      %c0_28 = arith.constant 0 : index
      %c2 = arith.constant 2 : index
      %c0_29 = arith.constant 0 : index
      %47 = vector.load %arg7[%c0_28, %c2, %c0_29] : memref<1x8x128xf32, #tpu.memory_space<vmem>>, vector<1x1x128xf32>
      tpu.vector_store %arg7[%c0_28, %c2, %c0_29], %46 {strides = array<i32>} : memref<1x8x128xf32, #tpu.memory_space<vmem>>, vector<1x1x128xf32>,
    } else {
    }
    %c0_i32_13 = arith.constant 0 : i32
    %21 = arith.cmpi eq, %arg1, %c0_i32_13 : i32
    %22 = arith.extui %21 : i1 to i32
    %c0_i32_14 = arith.constant 0 : i32
    %23 = arith.cmpi ne, %22, %c0_i32_14 : i32
    scf.if %23 {
      %c0_15 = arith.constant 0 : index
      %c0_16 = arith.constant 0 : index
      %24 = vector.load %arg8[%c0_15, %c0_16] : memref<1x256xf32, #tpu.memory_space<vmem>>, vector<1x256xf32>
      %25 = vector.shape_cast %24 : vector<1x256xf32> to vector<1x1x256xf32>
      %cst_17 = arith.constant dense<0.000000e+00> : vector<1xf32>
      %26 = vector.multi_reduction <add>, %25, %cst_17 [1, 2] : vector<1x1x256xf32> to vector<1xf32>
      %27 = vector.shape_cast %26 : vector<1xf32> to vector<1x1x1xf32>
      %28 = vector.extract %27[0, 0, 0] : f32 from vector<1x1x1xf32>
      %29 = vector.broadcast %28 : f32 to vector<1x1x128xf32>
      %c0_18 = arith.constant 0 : index
      %c0_19 = arith.constant 0 : index
      %c0_20 = arith.constant 0 : index
      %30 = vector.load %arg7[%c0_18, %c0_19, %c0_20] : memref<1x8x128xf32, #tpu.memory_space<vmem>>, vector<1x1x128xf32>
      tpu.vector_store %arg7[%c0_18, %c0_19, %c0_20], %29 {strides = array<i32>} : memref<1x8x128xf32, #tpu.memory_space<vmem>>, vector<1x1x128xf32>,
    } else {
    }
    return
  }
  func.func @transform_0(%arg0: i32, %arg1: i32) -> (i32, i32) {
    %c1_i32 = arith.constant 1 : i32
    %0 = arith.muli %arg0, %c1_i32 : i32
    %1 = arith.addi %0, %arg1 : i32
    %c0_i32 = arith.constant 0 : i32
    %c0_i32_0 = arith.constant 0 : i32
    return %1, %c0_i32 : i32, i32
  }
  func.func @transform_1(%arg0: i32, %arg1: i32) -> (i32, i32) {
    %c1_i32 = arith.constant 1 : i32
    %0 = arith.muli %arg0, %c1_i32 : i32
    %1 = arith.addi %0, %arg1 : i32
    %c0_i32 = arith.constant 0 : i32
    %c0_i32_0 = arith.constant 0 : i32
    return %1, %c0_i32 : i32, i32
  }
  func.func @transform_2(%arg0: i32, %arg1: i32) -> (i32, i32) {
    %c0_i32 = arith.constant 0 : i32
    %c0_i32_0 = arith.constant 0 : i32
    %c0_i32_1 = arith.constant 0 : i32
    return %c0_i32, %c0_i32_0 : i32, i32
  }
  func.func @transform_3(%arg0: i32, %arg1: i32) -> (i32, i32) {
    %c0_i32 = arith.constant 0 : i32
    %c0_i32_0 = arith.constant 0 : i32
    %c0_i32_1 = arith.constant 0 : i32
    return %c0_i32, %c0_i32_0 : i32, i32
  }
  func.func @transform_4(%arg0: i32, %arg1: i32) -> (i32, i32) {
    %c0_i32 = arith.constant 0 : i32
    %c0_i32_0 = arith.constant 0 : i32
    %c0_i32_1 = arith.constant 0 : i32
    return %c0_i32, %c0_i32_0 : i32, i32
  }
  func.func @transform_5(%arg0: i32, %arg1: i32) -> (i32, i32, i32) {
    %c0_i32 = arith.constant 0 : i32
    %c0_i32_0 = arith.constant 0 : i32
    %c0_i32_1 = arith.constant 0 : i32
    return %arg0, %c0_i32, %c0_i32_0 : i32, i32, i32
  }
}

</mosaic_0001>

<llo_original>
// kernel: tpu_custom_call.1
$region0: #{tpu_custom_call.1}
  #allocation0 [shape = 'u32[]', space=smem, size = 0x4, offset = 0x4, fixed_abs, tag = 'smem constant byte address 0x4 - core index']
  #allocation1 [shape = 'u32[144,128]{1,0:T(1,128)}', space=vmem, size = 0x12000, scoped, tag = 'internal scratch']
  #allocation2 [shape = 'f32[1,256]{1,0:T(1,128)}', space=vmem, size = 0x400, scoped, tag = 'scratch operand']
  %s0 = inlined_call_operand.hbm [shape: f32[512,256], index: 0, kind: input, shape index: {}]
  %s1 = inlined_call_operand.hbm [shape: f32[512,256], index: 1, kind: input, shape index: {}]
  %s2 = inlined_call_operand.hbm [shape: f32[64,128], index: 2, kind: input, shape index: {}]
  %s3 = inlined_call_operand.vmem [shape: f32[2,10], index: 3, kind: input, shape index: {}]
  %s4 = inlined_call_operand.vmem [shape: f32[2,10], index: 4, kind: input, shape index: {}]
  %s5 = inlined_call_operand.hbm [shape: f32[1,8,128], index: 5, kind: output, shape index: {}]
  %s6 = sld [smem:[#allocation0]]
  $region54: #{tpu_custom_call.1} parent=0
    _
  %s8 = ssub.s32 1, %s6
  %s9 = scalar_select 0, %s8, %s6
  $region1: #{tpu_custom_call.1} parent=0
    #allocation3 [shape = 'u8[524288]{0}', space=vmem, size = 0x80000, scoped, tag = 'input window, operand 0, single buffered']
    #allocation4 [shape = 's32[1]{0}', space=sflag, size = 0x4, scoped, tag = 'scoped memory for tpu_custom_call.1']
    #allocation5 [shape = 's32[1]{0}', space=sflag, size = 0x4, scoped, tag = 'scoped memory for tpu_custom_call.1']
    #allocation6 [shape = 'u8[524288]{0}', space=vmem, size = 0x80000, scoped, tag = 'input window, operand 1, single buffered']
    #allocation7 [shape = 's32[1]{0}', space=sflag, size = 0x4, scoped, tag = 'scoped memory for tpu_custom_call.1']
    #allocation8 [shape = 'u8[32768]{0}', space=vmem, size = 0x8000, scoped, tag = 'input window, operand 2, single buffered']
    #allocation9 [shape = 'u8[4096]{0}', space=vmem, size = 0x1000, scoped, tag = 'output window, operand 0, single buffered']
    %10 = vsyncpa [#allocation4], 0
    %11 = vsyncpa [#allocation7], 0
    %12 = vsyncpa [#allocation5], 0
    // Predicated region
    $region2: #{tpu_custom_call.1} parent=1 // pred_check
      _
    $region3: #{tpu_custom_call.1} parent=1 // pred_check_branch
      %14 = sbr.rel (0) target = $region5
    $region4: #{tpu_custom_call.1} parent=1 // pred_region
      %s15 = sadd.s32 0, 0
      %s16 = smul.u32 64, %s15
      %s18 = ssub.s32 16384, 16384
      %19 = vsyncadd [#allocation4], %s18
      %s20 = smul.addr %s16, 2
      %s21 = smul.addr %s20, 128
      %s22 = scalar_lea.hbm %s0, %s21
      %s23 = sshll.u32 [#allocation3], 4
      %s24 = int_to_ptr.vmem [resolvable:$true] %s23
      %29 = dma.hbm_to_vmem [thread:$0]  %s22, 16384, %s24, [#allocation4], 256, 256, 16
    $region5: #{tpu_custom_call.1} parent=1 // pred_fallthru
      _
    // Predicated region
    $region6: #{tpu_custom_call.1} parent=1 // pred_check
      _
    $region7: #{tpu_custom_call.1} parent=1 // pred_check_branch
      %31 = sbr.rel (0) target = $region9
    $region8: #{tpu_custom_call.1} parent=1 // pred_region
      %s32 = sadd.s32 0, 0
      %s33 = smul.u32 64, %s32
      %s35 = ssub.s32 16384, 16384
      %36 = vsyncadd [#allocation7], %s35
      %s37 = smul.addr %s33, 2
      %s38 = smul.addr %s37, 128
      %s39 = scalar_lea.hbm %s1, %s38
      %s40 = sshll.u32 [#allocation6], 4
      %s41 = int_to_ptr.vmem [resolvable:$true] %s40
      %46 = dma.hbm_to_vmem [thread:$0]  %s39, 16384, %s41, [#allocation7], 256, 256, 16
    $region9: #{tpu_custom_call.1} parent=1 // pred_fallthru
      _
    // Predicated region
    $region10: #{tpu_custom_call.1} parent=1 // pred_check
      _
    $region11: #{tpu_custom_call.1} parent=1 // pred_check_branch
      %48 = sbr.rel (0) target = $region13
    $region12: #{tpu_custom_call.1} parent=1 // pred_region
      %s50 = ssub.s32 1024, 1024
      %51 = vsyncadd [#allocation7], %s50
      %s52 = sshll.u32 [#allocation8], 4
      %s53 = int_to_ptr.vmem [resolvable:$true] %s52
      %58 = dma.hbm_to_vmem [thread:$0]  %s2, 1024, %s53, [#allocation7], 128, 128, 8
    $region13: #{tpu_custom_call.1} parent=1 // pred_fallthru
      _
    // Predicated region
    $region14: #{tpu_custom_call.1} parent=1 // pred_check
      _
    $region15: #{tpu_custom_call.1} parent=1 // pred_check_branch
      %60 = sbr.rel (0) target = $region17
    $region16: #{tpu_custom_call.1} parent=1 // pred_region
      _
    $region17: #{tpu_custom_call.1} parent=1 // pred_fallthru
      _
    // Predicated region
    $region18: #{tpu_custom_call.1} parent=1 // pred_check
      _
    $region19: #{tpu_custom_call.1} parent=1 // pred_check_branch
      %62 = sbr.rel (0) target = $region21
    $region20: #{tpu_custom_call.1} parent=1 // pred_region
      _
    $region21: #{tpu_custom_call.1} parent=1 // pred_fallthru
      _
    // Predicated region
    $region22: #{tpu_custom_call.1} parent=1 // pred_check
      _
    $region23: #{tpu_custom_call.1} parent=1 // pred_check_branch
      %64 = sbr.rel (0) target = $region25
    $region24: #{tpu_custom_call.1} parent=1 // pred_region
      %65 = dma.done [#allocation4], 16384
    $region25: #{tpu_custom_call.1} parent=1 // pred_fallthru
      _
    // Predicated region
    $region26: #{tpu_custom_call.1} parent=1 // pred_check
      _
    $region27: #{tpu_custom_call.1} parent=1 // pred_check_branch
      %67 = sbr.rel (0) target = $region29
    $region28: #{tpu_custom_call.1} parent=1 // pred_region
      %68 = dma.done [#allocation7], 16384
    $region29: #{tpu_custom_call.1} parent=1 // pred_fallthru
      _
    // Predicated region
    $region30: #{tpu_custom_call.1} parent=1 // pred_check
      _
    $region31: #{tpu_custom_call.1} parent=1 // pred_check_branch
      %70 = sbr.rel (0) target = $region33
    $region32: #{tpu_custom_call.1} parent=1 // pred_region
      %71 = dma.done [#allocation7], 1024
    $region33: #{tpu_custom_call.1} parent=1 // pred_fallthru
      _
    %s72 = sadd.s32 0, 0
    %s73 = smul.u32 64, %s72
    %s74 = sadd.s32 0, 0
    %s75 = smul.u32 64, %s74
    %p77 = scmp.eq.s32.totalorder 0, 0
    // Predicated region
    $region34: #{tpu_custom_call.1} parent=1 // pred_check
      %p78 = pneg %p77
    $region35: #{tpu_custom_call.1} parent=1 // pred_check_branch
      %80 = sbr.rel (%p78) target = $region37
    $region36: #{tpu_custom_call.1} parent=1 // pred_region
      %81 = vst [vmem:[#allocation9] sm:$0xff] 0.0
      %v82 = vlaneseq
      %vm83 = vcmp.ge.s32.totalorder %v82, 0
      %vm84 = vcmp.lt.s32.totalorder %v82, 256
      %vm85 = vmand %vm83, %vm84
      %86 = vst.msk [vmem:[#allocation2] sm:$0x3] %vm85, 0.0
    $region37: #{tpu_custom_call.1} parent=1 // pred_fallthru
      _
    %v87 = vld [vmem:[#allocation3] sm:$0xff]
    %v88 = vld [vmem:[#allocation3 + $0x8] sm:$0xff]
    %v89 = vld [vmem:[#allocation3 + $0x10] sm:$0xff]
    %v90 = vld [vmem:[#allocation3 + $0x18] sm:$0xff]
    %v91 = vld [vmem:[#allocation3 + $0x20] sm:$0xff]
    %v92 = vld [vmem:[#allocation3 + $0x28] sm:$0xff]
    %v93 = vld [vmem:[#allocation3 + $0x30] sm:$0xff]
    %v94 = vld [vmem:[#allocation3 + $0x38] sm:$0xff]
    %v95 = vld [vmem:[#allocation3 + $0x40] sm:$0xff]
    %v96 = vld [vmem:[#allocation3 + $0x48] sm:$0xff]
    %v97 = vld [vmem:[#allocation3 + $0x50] sm:$0xff]
    %v98 = vld [vmem:[#allocation3 + $0x58] sm:$0xff]
    %v99 = vld [vmem:[#allocation3 + $0x60] sm:$0xff]
    %v100 = vld [vmem:[#allocation3 + $0x68] sm:$0xff]
    %v101 = vld [vmem:[#allocation3 + $0x70] sm:$0xff]
    %v102 = vld [vmem:[#allocation3 + $0x78] sm:$0xff]
    %v103 = vld [vmem:[#allocation3 + $0x80] sm:$0xff]
    %v104 = vld [vmem:[#allocation3 + $0x88] sm:$0xff]
    %v105 = vld [vmem:[#allocation3 + $0x90] sm:$0xff]
    %v106 = vld [vmem:[#allocation3 + $0x98] sm:$0xff]
    %v107 = vld [vmem:[#allocation3 + $0xa0] sm:$0xff]
    %v108 = vld [vmem:[#allocation3 + $0xa8] sm:$0xff]
    %v109 = vld [vmem:[#allocation3 + $0xb0] sm:$0xff]
    %v110 = vld [vmem:[#allocation3 + $0xb8] sm:$0xff]
    %v111 = vld [vmem:[#allocation3 + $0xc0] sm:$0xff]
    %v112 = vld [vmem:[#allocation3 + $0xc8] sm:$0xff]
    %v113 = vld [vmem:[#allocation3 + $0xd0] sm:$0xff]
    %v114 = vld [vmem:[#allocation3 + $0xd8] sm:$0xff]
    %v115 = vld [vmem:[#allocation3 + $0xe0] sm:$0xff]
    %v116 = vld [vmem:[#allocation3 + $0xe8] sm:$0xff]
    %v117 = vld [vmem:[#allocation3 + $0xf0] sm:$0xff]
    %v118 = vld [vmem:[#allocation3 + $0xf8] sm:$0xff]
    %v119 = vld [vmem:[#allocation3 + $0x100] sm:$0xff]
    %v120 = vld [vmem:[#allocation3 + $0x108] sm:$0xff]
    %v121 = vld [vmem:[#allocation3 + $0x110] sm:$0xff]
    %v122 = vld [vmem:[#allocation3 + $0x118] sm:$0xff]
    %v123 = vld [vmem:[#allocation3 + $0x120] sm:$0xff]
    %v124 = vld [vmem:[#allocation3 + $0x128] sm:$0xff]
    %v125 = vld [vmem:[#allocation3 + $0x130] sm:$0xff]
    %v126 = vld [vmem:[#allocation3 + $0x138] sm:$0xff]
    %v127 = vld [vmem:[#allocation3 + $0x140] sm:$0xff]
    %v128 = vld [vmem:[#allocation3 + $0x148] sm:$0xff]
    %v129 = vld [vmem:[#allocation3 + $0x150] sm:$0xff]
    %v130 = vld [vmem:[#allocation3 + $0x158] sm:$0xff]
    %v131 = vld [vmem:[#allocation3 + $0x160] sm:$0xff]
    %v132 = vld [vmem:[#allocation3 + $0x168] sm:$0xff]
    %v133 = vld [vmem:[#allocation3 + $0x170] sm:$0xff]
    %v134 = vld [vmem:[#allocation3 + $0x178] sm:$0xff]
    %v135 = vld [vmem:[#allocation3 + $0x180] sm:$0xff]
    %v136 = vld [vmem:[#allocation3 + $0x188] sm:$0xff]
    %v137 = vld [vmem:[#allocation3 + $0x190] sm:$0xff]
    %v138 = vld [vmem:[#allocation3 + $0x198] sm:$0xff]
    %v139 = vld [vmem:[#allocation3 + $0x1a0] sm:$0xff]
    %v140 = vld [vmem:[#allocation3 + $0x1a8] sm:$0xff]
    %v141 = vld [vmem:[#allocation3 + $0x1b0] sm:$0xff]
    %v142 = vld [vmem:[#allocation3 + $0x1b8] sm:$0xff]
    %v143 = vld [vmem:[#allocation3 + $0x1c0] sm:$0xff]
    %v144 = vld [vmem:[#allocation3 + $0x1c8] sm:$0xff]
    %v145 = vld [vmem:[#allocation3 + $0x1d0] sm:$0xff]
    %v146 = vld [vmem:[#allocation3 + $0x1d8] sm:$0xff]
    %v147 = vld [vmem:[#allocation3 + $0x1e0] sm:$0xff]
    %v148 = vld [vmem:[#allocation3 + $0x1e8] sm:$0xff]
    %v149 = vld [vmem:[#allocation3 + $0x1f0] sm:$0xff]
    %v150 = vld [vmem:[#allocation3 + $0x1f8] sm:$0xff]
    %v151 = vld [vmem:[#allocation3 + $0x200] sm:$0xff]
    %v152 = vld [vmem:[#allocation3 + $0x208] sm:$0xff]
    %v153 = vld [vmem:[#allocation3 + $0x210] sm:$0xff]
    %v154 = vld [vmem:[#allocation3 + $0x218] sm:$0xff]
    %v155 = vld [vmem:[#allocation3 + $0x220] sm:$0xff]
    %v156 = vld [vmem:[#allocation3 + $0x228] sm:$0xff]
    %v157 = vld [vmem:[#allocation3 + $0x230] sm:$0xff]
    %v158 = vld [vmem:[#allocation3 + $0x238] sm:$0xff]
    %v159 = vld [vmem:[#allocation3 + $0x240] sm:$0xff]
    %v160 = vld [vmem:[#allocation3 + $0x248] sm:$0xff]
    %v161 = vld [vmem:[#allocation3 + $0x250] sm:$0xff]
    %v162 = vld [vmem:[#allocation3 + $0x258] sm:$0xff]
    %v163 = vld [vmem:[#allocation3 + $0x260] sm:$0xff]
    %v164 = vld [vmem:[#allocation3 + $0x268] sm:$0xff]
    %v165 = vld [vmem:[#allocation3 + $0x270] sm:$0xff]
    %v166 = vld [vmem:[#allocation3 + $0x278] sm:$0xff]
    %v167 = vld [vmem:[#allocation3 + $0x280] sm:$0xff]
    %v168 = vld [vmem:[#allocation3 + $0x288] sm:$0xff]
    %v169 = vld [vmem:[#allocation3 + $0x290] sm:$0xff]
    %v170 = vld [vmem:[#allocation3 + $0x298] sm:$0xff]
    %v171 = vld [vmem:[#allocation3 + $0x2a0] sm:$0xff]
    %v172 = vld [vmem:[#allocation3 + $0x2a8] sm:$0xff]
    %v173 = vld [vmem:[#allocation3 + $0x2b0] sm:$0xff]
    %v174 = vld [vmem:[#allocation3 + $0x2b8] sm:$0xff]
    %v175 = vld [vmem:[#allocation3 + $0x2c0] sm:$0xff]
    %v176 = vld [vmem:[#allocation3 + $0x2c8] sm:$0xff]
    %v177 = vld [vmem:[#allocation3 + $0x2d0] sm:$0xff]
    %v178 = vld [vmem:[#allocation3 + $0x2d8] sm:$0xff]
    %v179 = vld [vmem:[#allocation3 + $0x2e0] sm:$0xff]
    %v180 = vld [vmem:[#allocation3 + $0x2e8] sm:$0xff]
    %v181 = vld [vmem:[#allocation3 + $0x2f0] sm:$0xff]
    %v182 = vld [vmem:[#allocation3 + $0x2f8] sm:$0xff]
    %v183 = vld [vmem:[#allocation3 + $0x300] sm:$0xff]
    %v184 = vld [vmem:[#allocation3 + $0x308] sm:$0xff]
    %v185 = vld [vmem:[#allocation3 + $0x310] sm:$0xff]
    %v186 = vld [vmem:[#allocation3 + $0x318] sm:$0xff]
    %v187 = vld [vmem:[#allocation3 + $0x320] sm:$0xff]
    %v188 = vld [vmem:[#allocation3 + $0x328] sm:$0xff]
    %v189 = vld [vmem:[#allocation3 + $0x330] sm:$0xff]
    %v190 = vld [vmem:[#allocation3 + $0x338] sm:$0xff]
    %v191 = vld [vmem:[#allocation3 + $0x340] sm:$0xff]
    %v192 = vld [vmem:[#allocation3 + $0x348] sm:$0xff]
    %v193 = vld [vmem:[#allocation3 + $0x350] sm:$0xff]
    %v194 = vld [vmem:[#allocation3 + $0x358] sm:$0xff]
    %v195 = vld [vmem:[#allocation3 + $0x360] sm:$0xff]
    %v196 = vld [vmem:[#allocation3 + $0x368] sm:$0xff]
    %v197 = vld [vmem:[#allocation3 + $0x370] sm:$0xff]
    %v198 = vld [vmem:[#allocation3 + $0x378] sm:$0xff]
    %v199 = vld [vmem:[#allocation3 + $0x380] sm:$0xff]
    %v200 = vld [vmem:[#allocation3 + $0x388] sm:$0xff]
    %v201 = vld [vmem:[#allocation3 + $0x390] sm:$0xff]
    %v202 = vld [vmem:[#allocation3 + $0x398] sm:$0xff]
    %v203 = vld [vmem:[#allocation3 + $0x3a0] sm:$0xff]
    %v204 = vld [vmem:[#allocation3 + $0x3a8] sm:$0xff]
    %v205 = vld [vmem:[#allocation3 + $0x3b0] sm:$0xff]
    %v206 = vld [vmem:[#allocation3 + $0x3b8] sm:$0xff]
    %v207 = vld [vmem:[#allocation3 + $0x3c0] sm:$0xff]
    %v208 = vld [vmem:[#allocation3 + $0x3c8] sm:$0xff]
    %v209 = vld [vmem:[#allocation3 + $0x3d0] sm:$0xff]
    %v210 = vld [vmem:[#allocation3 + $0x3d8] sm:$0xff]
    %v211 = vld [vmem:[#allocation3 + $0x3e0] sm:$0xff]
    %v212 = vld [vmem:[#allocation3 + $0x3e8] sm:$0xff]
    %v213 = vld [vmem:[#allocation3 + $0x3f0] sm:$0xff]
    %v214 = vld [vmem:[#allocation3 + $0x3f8] sm:$0xff]
    %v215 = vmax.f32 %v87, 1e-06
    %v216 = vmax.f32 %v88, 1e-06
    %v217 = vmax.f32 %v89, 1e-06
    %v218 = vmax.f32 %v90, 1e-06
    %v219 = vmax.f32 %v91, 1e-06
    %v220 = vmax.f32 %v92, 1e-06
    %v221 = vmax.f32 %v93, 1e-06
    %v222 = vmax.f32 %v94, 1e-06
    %v223 = vmax.f32 %v95, 1e-06
    %v224 = vmax.f32 %v96, 1e-06
    %v225 = vmax.f32 %v97, 1e-06
    %v226 = vmax.f32 %v98, 1e-06
    %v227 = vmax.f32 %v99, 1e-06
    %v228 = vmax.f32 %v100, 1e-06
    %v229 = vmax.f32 %v101, 1e-06
    %v230 = vmax.f32 %v102, 1e-06
    %v231 = vmax.f32 %v103, 1e-06
    %v232 = vmax.f32 %v104, 1e-06
    %v233 = vmax.f32 %v105, 1e-06
    %v234 = vmax.f32 %v106, 1e-06
    %v235 = vmax.f32 %v107, 1e-06
    %v236 = vmax.f32 %v108, 1e-06
    %v237 = vmax.f32 %v109, 1e-06
    %v238 = vmax.f32 %v110, 1e-06
    %v239 = vmax.f32 %v111, 1e-06
    %v240 = vmax.f32 %v112, 1e-06
    %v241 = vmax.f32 %v113, 1e-06
    %v242 = vmax.f32 %v114, 1e-06
    %v243 = vmax.f32 %v115, 1e-06
    %v244 = vmax.f32 %v116, 1e-06
    %v245 = vmax.f32 %v117, 1e-06
    %v246 = vmax.f32 %v118, 1e-06
    %v247 = vmax.f32 %v119, 1e-06
    %v248 = vmax.f32 %v120, 1e-06
    %v249 = vmax.f32 %v121, 1e-06
    %v250 = vmax.f32 %v122, 1e-06
    %v251 = vmax.f32 %v123, 1e-06
    %v252 = vmax.f32 %v124, 1e-06
    %v253 = vmax.f32 %v125, 1e-06
    %v254 = vmax.f32 %v126, 1e-06
    %v255 = vmax.f32 %v127, 1e-06
    %v256 = vmax.f32 %v128, 1e-06
    %v257 = vmax.f32 %v129, 1e-06
    %v258 = vmax.f32 %v130, 1e-06
    %v259 = vmax.f32 %v131, 1e-06
    %v260 = vmax.f32 %v132, 1e-06
    %v261 = vmax.f32 %v133, 1e-06
    %v262 = vmax.f32 %v134, 1e-06
    %v263 = vmax.f32 %v135, 1e-06
    %v264 = vmax.f32 %v136, 1e-06
    %v265 = vmax.f32 %v137, 1e-06
    %v266 = vmax.f32 %v138, 1e-06
    %v267 = vmax.f32 %v139, 1e-06
    %v268 = vmax.f32 %v140, 1e-06
    %v269 = vmax.f32 %v141, 1e-06
    %v270 = vmax.f32 %v142, 1e-06
    %v271 = vmax.f32 %v143, 1e-06
    %v272 = vmax.f32 %v144, 1e-06
    %v273 = vmax.f32 %v145, 1e-06
    %v274 = vmax.f32 %v146, 1e-06
    %v275 = vmax.f32 %v147, 1e-06
    %v276 = vmax.f32 %v148, 1e-06
    %v277 = vmax.f32 %v149, 1e-06
    %v278 = vmax.f32 %v150, 1e-06
    %v279 = vmax.f32 %v151, 1e-06
    %v280 = vmax.f32 %v152, 1e-06
    %v281 = vmax.f32 %v153, 1e-06
    %v282 = vmax.f32 %v154, 1e-06
    %v283 = vmax.f32 %v155, 1e-06
    %v284 = vmax.f32 %v156, 1e-06
    %v285 = vmax.f32 %v157, 1e-06
    %v286 = vmax.f32 %v158, 1e-06
    %v287 = vmax.f32 %v159, 1e-06
    %v288 = vmax.f32 %v160, 1e-06
    %v289 = vmax.f32 %v161, 1e-06
    %v290 = vmax.f32 %v162, 1e-06
    %v291 = vmax.f32 %v163, 1e-06
    %v292 = vmax.f32 %v164, 1e-06
    %v293 = vmax.f32 %v165, 1e-06
    %v294 = vmax.f32 %v166, 1e-06
    %v295 = vmax.f32 %v167, 1e-06
    %v296 = vmax.f32 %v168, 1e-06
    %v297 = vmax.f32 %v169, 1e-06
    %v298 = vmax.f32 %v170, 1e-06
    %v299 = vmax.f32 %v171, 1e-06
    %v300 = vmax.f32 %v172, 1e-06
    %v301 = vmax.f32 %v173, 1e-06
    %v302 = vmax.f32 %v174, 1e-06
    %v303 = vmax.f32 %v175, 1e-06
    %v304 = vmax.f32 %v176, 1e-06
    %v305 = vmax.f32 %v177, 1e-06
    %v306 = vmax.f32 %v178, 1e-06
    %v307 = vmax.f32 %v179, 1e-06
    %v308 = vmax.f32 %v180, 1e-06
    %v309 = vmax.f32 %v181, 1e-06
    %v310 = vmax.f32 %v182, 1e-06
    %v311 = vmax.f32 %v183, 1e-06
    %v312 = vmax.f32 %v184, 1e-06
    %v313 = vmax.f32 %v185, 1e-06
    %v314 = vmax.f32 %v186, 1e-06
    %v315 = vmax.f32 %v187, 1e-06
    %v316 = vmax.f32 %v188, 1e-06
    %v317 = vmax.f32 %v189, 1e-06
    %v318 = vmax.f32 %v190, 1e-06
    %v319 = vmax.f32 %v191, 1e-06
    %v320 = vmax.f32 %v192, 1e-06
    %v321 = vmax.f32 %v193, 1e-06
    %v322 = vmax.f32 %v194, 1e-06
    %v323 = vmax.f32 %v195, 1e-06
    %v324 = vmax.f32 %v196, 1e-06
    %v325 = vmax.f32 %v197, 1e-06
    %v326 = vmax.f32 %v198, 1e-06
    %v327 = vmax.f32 %v199, 1e-06
    %v328 = vmax.f32 %v200, 1e-06
    %v329 = vmax.f32 %v201, 1e-06
    %v330 = vmax.f32 %v202, 1e-06
    %v331 = vmax.f32 %v203, 1e-06
    %v332 = vmax.f32 %v204, 1e-06
    %v333 = vmax.f32 %v205, 1e-06
    %v334 = vmax.f32 %v206, 1e-06
    %v335 = vmax.f32 %v207, 1e-06
    %v336 = vmax.f32 %v208, 1e-06
    %v337 = vmax.f32 %v209, 1e-06
    %v338 = vmax.f32 %v210, 1e-06
    %v339 = vmax.f32 %v211, 1e-06
    %v340 = vmax.f32 %v212, 1e-06
    %v341 = vmax.f32 %v213, 1e-06
    %v342 = vmax.f32 %v214, 1e-06
    %v343 = vld [vmem:[#allocation6] sm:$0xff]
    %v344 = vld [vmem:[#allocation6 + $0x8] sm:$0xff]
    %v345 = vld [vmem:[#allocation6 + $0x10] sm:$0xff]
    %v346 = vld [vmem:[#allocation6 + $0x18] sm:$0xff]
    %v347 = vld [vmem:[#allocation6 + $0x20] sm:$0xff]
    %v348 = vld [vmem:[#allocation6 + $0x28] sm:$0xff]
    %v349 = vld [vmem:[#allocation6 + $0x30] sm:$0xff]
    %v350 = vld [vmem:[#allocation6 + $0x38] sm:$0xff]
    %v351 = vld [vmem:[#allocation6 + $0x40] sm:$0xff]
    %v352 = vld [vmem:[#allocation6 + $0x48] sm:$0xff]
    %v353 = vld [vmem:[#allocation6 + $0x50] sm:$0xff]
    %v354 = vld [vmem:[#allocation6 + $0x58] sm:$0xff]
    %v355 = vld [vmem:[#allocation6 + $0x60] sm:$0xff]
    %v356 = vld [vmem:[#allocation6 + $0x68] sm:$0xff]
    %v357 = vld [vmem:[#allocation6 + $0x70] sm:$0xff]
    %v358 = vld [vmem:[#allocation6 + $0x78] sm:$0xff]
    %v359 = vld [vmem:[#allocation6 + $0x80] sm:$0xff]
    %v360 = vld [vmem:[#allocation6 + $0x88] sm:$0xff]
    %v361 = vld [vmem:[#allocation6 + $0x90] sm:$0xff]
    %v362 = vld [vmem:[#allocation6 + $0x98] sm:$0xff]
    %v363 = vld [vmem:[#allocation6 + $0xa0] sm:$0xff]
    %v364 = vld [vmem:[#allocation6 + $0xa8] sm:$0xff]
    %v365 = vld [vmem:[#allocation6 + $0xb0] sm:$0xff]
    %v366 = vld [vmem:[#allocation6 + $0xb8] sm:$0xff]
    %v367 = vld [vmem:[#allocation6 + $0xc0] sm:$0xff]
    %v368 = vld [vmem:[#allocation6 + $0xc8] sm:$0xff]
    %v369 = vld [vmem:[#allocation6 + $0xd0] sm:$0xff]
    %v370 = vld [vmem:[#allocation6 + $0xd8] sm:$0xff]
    %v371 = vld [vmem:[#allocation6 + $0xe0] sm:$0xff]
    %v372 = vld [vmem:[#allocation6 + $0xe8] sm:$0xff]
    %v373 = vld [vmem:[#allocation6 + $0xf0] sm:$0xff]
    %v374 = vld [vmem:[#allocation6 + $0xf8] sm:$0xff]
    %v375 = vld [vmem:[#allocation6 + $0x100] sm:$0xff]
    %v376 = vld [vmem:[#allocation6 + $0x108] sm:$0xff]
    %v377 = vld [vmem:[#allocation6 + $0x110] sm:$0xff]
    %v378 = vld [vmem:[#allocation6 + $0x118] sm:$0xff]
    %v379 = vld [vmem:[#allocation6 + $0x120] sm:$0xff]
    %v380 = vld [vmem:[#allocation6 + $0x128] sm:$0xff]
    %v381 = vld [vmem:[#allocation6 + $0x130] sm:$0xff]
    %v382 = vld [vmem:[#allocation6 + $0x138] sm:$0xff]
    %v383 = vld [vmem:[#allocation6 + $0x140] sm:$0xff]
    %v384 = vld [vmem:[#allocation6 + $0x148] sm:$0xff]
    %v385 = vld [vmem:[#allocation6 + $0x150] sm:$0xff]
    %v386 = vld [vmem:[#allocation6 + $0x158] sm:$0xff]
    %v387 = vld [vmem:[#allocation6 + $0x160] sm:$0xff]
    %v388 = vld [vmem:[#allocation6 + $0x168] sm:$0xff]
    %v389 = vld [vmem:[#allocation6 + $0x170] sm:$0xff]
    %v390 = vld [vmem:[#allocation6 + $0x178] sm:$0xff]
    %v391 = vld [vmem:[#allocation6 + $0x180] sm:$0xff]
    %v392 = vld [vmem:[#allocation6 + $0x188] sm:$0xff]
    %v393 = vld [vmem:[#allocation6 + $0x190] sm:$0xff]
    %v394 = vld [vmem:[#allocation6 + $0x198] sm:$0xff]
    %v395 = vld [vmem:[#allocation6 + $0x1a0] sm:$0xff]
    %v396 = vld [vmem:[#allocation6 + $0x1a8] sm:$0xff]
    %v397 = vld [vmem:[#allocation6 + $0x1b0] sm:$0xff]
    %v398 = vld [vmem:[#allocation6 + $0x1b8] sm:$0xff]
    %v399 = vld [vmem:[#allocation6 + $0x1c0] sm:$0xff]
    %v400 = vld [vmem:[#allocation6 + $0x1c8] sm:$0xff]
    %v401 = vld [vmem:[#allocation6 + $0x1d0] sm:$0xff]
    %v402 = vld [vmem:[#allocation6 + $0x1d8] sm:$0xff]
    %v403 = vld [vmem:[#allocation6 + $0x1e0] sm:$0xff]
    %v404 = vld [vmem:[#allocation6 + $0x1e8] sm:$0xff]
    %v405 = vld [vmem:[#allocation6 + $0x1f0] sm:$0xff]
    %v406 = vld [vmem:[#allocation6 + $0x1f8] sm:$0xff]
    %v407 = vld [vmem:[#allocation6 + $0x200] sm:$0xff]
    %v408 = vld [vmem:[#allocation6 + $0x208] sm:$0xff]
    %v409 = vld [vmem:[#allocation6 + $0x210] sm:$0xff]
    %v410 = vld [vmem:[#allocation6 + $0x218] sm:$0xff]
    %v411 = vld [vmem:[#allocation6 + $0x220] sm:$0xff]
    %v412 = vld [vmem:[#allocation6 + $0x228] sm:$0xff]
    %v413 = vld [vmem:[#allocation6 + $0x230] sm:$0xff]
    %v414 = vld [vmem:[#allocation6 + $0x238] sm:$0xff]
    %v415 = vld [vmem:[#allocation6 + $0x240] sm:$0xff]
    %v416 = vld [vmem:[#allocation6 + $0x248] sm:$0xff]
    %v417 = vld [vmem:[#allocation6 + $0x250] sm:$0xff]
    %v418 = vld [vmem:[#allocation6 + $0x258] sm:$0xff]
    %v419 = vld [vmem:[#allocation6 + $0x260] sm:$0xff]
    %v420 = vld [vmem:[#allocation6 + $0x268] sm:$0xff]
    %v421 = vld [vmem:[#allocation6 + $0x270] sm:$0xff]
    %v422 = vld [vmem:[#allocation6 + $0x278] sm:$0xff]
    %v423 = vld [vmem:[#allocation6 + $0x280] sm:$0xff]
    %v424 = vld [vmem:[#allocation6 + $0x288] sm:$0xff]
    %v425 = vld [vmem:[#allocation6 + $0x290] sm:$0xff]
    %v426 = vld [vmem:[#allocation6 + $0x298] sm:$0xff]
    %v427 = vld [vmem:[#allocation6 + $0x2a0] sm:$0xff]
    %v428 = vld [vmem:[#allocation6 + $0x2a8] sm:$0xff]
    %v429 = vld [vmem:[#allocation6 + $0x2b0] sm:$0xff]
    %v430 = vld [vmem:[#allocation6 + $0x2b8] sm:$0xff]
    %v431 = vld [vmem:[#allocation6 + $0x2c0] sm:$0xff]
    %v432 = vld [vmem:[#allocation6 + $0x2c8] sm:$0xff]
    %v433 = vld [vmem:[#allocation6 + $0x2d0] sm:$0xff]
    %v434 = vld [vmem:[#allocation6 + $0x2d8] sm:$0xff]
    %v435 = vld [vmem:[#allocation6 + $0x2e0] sm:$0xff]
    %v436 = vld [vmem:[#allocation6 + $0x2e8] sm:$0xff]
    %v437 = vld [vmem:[#allocation6 + $0x2f0] sm:$0xff]
    %v438 = vld [vmem:[#allocation6 + $0x2f8] sm:$0xff]
    %v439 = vld [vmem:[#allocation6 + $0x300] sm:$0xff]
    %v440 = vld [vmem:[#allocation6 + $0x308] sm:$0xff]
    %v441 = vld [vmem:[#allocation6 + $0x310] sm:$0xff]
    %v442 = vld [vmem:[#allocation6 + $0x318] sm:$0xff]
    %v443 = vld [vmem:[#allocation6 + $0x320] sm:$0xff]
    %v444 = vld [vmem:[#allocation6 + $0x328] sm:$0xff]
    %v445 = vld [vmem:[#allocation6 + $0x330] sm:$0xff]
    %v446 = vld [vmem:[#allocation6 + $0x338] sm:$0xff]
    %v447 = vld [vmem:[#allocation6 + $0x340] sm:$0xff]
    %v448 = vld [vmem:[#allocation6 + $0x348] sm:$0xff]
    %v449 = vld [vmem:[#allocation6 + $0x350] sm:$0xff]
    %v450 = vld [vmem:[#allocation6 + $0x358] sm:$0xff]
    %v451 = vld [vmem:[#allocation6 + $0x360] sm:$0xff]
    %v452 = vld [vmem:[#allocation6 + $0x368] sm:$0xff]
    %v453 = vld [vmem:[#allocation6 + $0x370] sm:$0xff]
    %v454 = vld [vmem:[#allocation6 + $0x378] sm:$0xff]
    %v455 = vld [vmem:[#allocation6 + $0x380] sm:$0xff]
    %v456 = vld [vmem:[#allocation6 + $0x388] sm:$0xff]
    %v457 = vld [vmem:[#allocation6 + $0x390] sm:$0xff]
    %v458 = vld [vmem:[#allocation6 + $0x398] sm:$0xff]
    %v459 = vld [vmem:[#allocation6 + $0x3a0] sm:$0xff]
    %v460 = vld [vmem:[#allocation6 + $0x3a8] sm:$0xff]
    %v461 = vld [vmem:[#allocation6 + $0x3b0] sm:$0xff]
    %v462 = vld [vmem:[#allocation6 + $0x3b8] sm:$0xff]
    %v463 = vld [vmem:[#allocation6 + $0x3c0] sm:$0xff]
    %v464 = vld [vmem:[#allocation6 + $0x3c8] sm:$0xff]
    %v465 = vld [vmem:[#allocation6 + $0x3d0] sm:$0xff]
    %v466 = vld [vmem:[#allocation6 + $0x3d8] sm:$0xff]
    %v467 = vld [vmem:[#allocation6 + $0x3e0] sm:$0xff]
    %v468 = vld [vmem:[#allocation6 + $0x3e8] sm:$0xff]
    %v469 = vld [vmem:[#allocation6 + $0x3f0] sm:$0xff]
    %v470 = vld [vmem:[#allocation6 + $0x3f8] sm:$0xff]
    %v471 = vmax.f32 %v343, 1e-06
    %v472 = vmax.f32 %v344, 1e-06
    %v473 = vmax.f32 %v345, 1e-06
    %v474 = vmax.f32 %v346, 1e-06
    %v475 = vmax.f32 %v347, 1e-06
    %v476 = vmax.f32 %v348, 1e-06
    %v477 = vmax.f32 %v349, 1e-06
    %v478 = vmax.f32 %v350, 1e-06
    %v479 = vmax.f32 %v351, 1e-06
    %v480 = vmax.f32 %v352, 1e-06
    %v481 = vmax.f32 %v353, 1e-06
    %v482 = vmax.f32 %v354, 1e-06
    %v483 = vmax.f32 %v355, 1e-06
    %v484 = vmax.f32 %v356, 1e-06
    %v485 = vmax.f32 %v357, 1e-06
    %v486 = vmax.f32 %v358, 1e-06
    %v487 = vmax.f32 %v359, 1e-06
    %v488 = vmax.f32 %v360, 1e-06
    %v489 = vmax.f32 %v361, 1e-06
    %v490 = vmax.f32 %v362, 1e-06
    %v491 = vmax.f32 %v363, 1e-06
    %v492 = vmax.f32 %v364, 1e-06
    %v493 = vmax.f32 %v365, 1e-06
    %v494 = vmax.f32 %v366, 1e-06
    %v495 = vmax.f32 %v367, 1e-06
    %v496 = vmax.f32 %v368, 1e-06
    %v497 = vmax.f32 %v369, 1e-06
    %v498 = vmax.f32 %v370, 1e-06
    %v499 = vmax.f32 %v371, 1e-06
    %v500 = vmax.f32 %v372, 1e-06
    %v501 = vmax.f32 %v373, 1e-06
    %v502 = vmax.f32 %v374, 1e-06
    %v503 = vmax.f32 %v375, 1e-06
    %v504 = vmax.f32 %v376, 1e-06
    %v505 = vmax.f32 %v377, 1e-06
    %v506 = vmax.f32 %v378, 1e-06
    %v507 = vmax.f32 %v379, 1e-06
    %v508 = vmax.f32 %v380, 1e-06
    %v509 = vmax.f32 %v381, 1e-06
    %v510 = vmax.f32 %v382, 1e-06
    %v511 = vmax.f32 %v383, 1e-06
    %v512 = vmax.f32 %v384, 1e-06
    %v513 = vmax.f32 %v385, 1e-06
    %v514 = vmax.f32 %v386, 1e-06
    %v515 = vmax.f32 %v387, 1e-06
    %v516 = vmax.f32 %v388, 1e-06
    %v517 = vmax.f32 %v389, 1e-06
    %v518 = vmax.f32 %v390, 1e-06
    %v519 = vmax.f32 %v391, 1e-06
    %v520 = vmax.f32 %v392, 1e-06
    %v521 = vmax.f32 %v393, 1e-06
    %v522 = vmax.f32 %v394, 1e-06
    %v523 = vmax.f32 %v395, 1e-06
    %v524 = vmax.f32 %v396, 1e-06
    %v525 = vmax.f32 %v397, 1e-06
    %v526 = vmax.f32 %v398, 1e-06
    %v527 = vmax.f32 %v399, 1e-06
    %v528 = vmax.f32 %v400, 1e-06
    %v529 = vmax.f32 %v401, 1e-06
    %v530 = vmax.f32 %v402, 1e-06
    %v531 = vmax.f32 %v403, 1e-06
    %v532 = vmax.f32 %v404, 1e-06
    %v533 = vmax.f32 %v405, 1e-06
    %v534 = vmax.f32 %v406, 1e-06
    %v535 = vmax.f32 %v407, 1e-06
    %v536 = vmax.f32 %v408, 1e-06
    %v537 = vmax.f32 %v409, 1e-06
    %v538 = vmax.f32 %v410, 1e-06
    %v539 = vmax.f32 %v411, 1e-06
    %v540 = vmax.f32 %v412, 1e-06
    %v541 = vmax.f32 %v413, 1e-06
    %v542 = vmax.f32 %v414, 1e-06
    %v543 = vmax.f32 %v415, 1e-06
    %v544 = vmax.f32 %v416, 1e-06
    %v545 = vmax.f32 %v417, 1e-06
    %v546 = vmax.f32 %v418, 1e-06
    %v547 = vmax.f32 %v419, 1e-06
    %v548 = vmax.f32 %v420, 1e-06
    %v549 = vmax.f32 %v421, 1e-06
    %v550 = vmax.f32 %v422, 1e-06
    %v551 = vmax.f32 %v423, 1e-06
    %v552 = vmax.f32 %v424, 1e-06
    %v553 = vmax.f32 %v425, 1e-06
    %v554 = vmax.f32 %v426, 1e-06
    %v555 = vmax.f32 %v427, 1e-06
    %v556 = vmax.f32 %v428, 1e-06
    %v557 = vmax.f32 %v429, 1e-06
    %v558 = vmax.f32 %v430, 1e-06
    %v559 = vmax.f32 %v431, 1e-06
    %v560 = vmax.f32 %v432, 1e-06
    %v561 = vmax.f32 %v433, 1e-06
    %v562 = vmax.f32 %v434, 1e-06
    %v563 = vmax.f32 %v435, 1e-06
    %v564 = vmax.f32 %v436, 1e-06
    %v565 = vmax.f32 %v437, 1e-06
    %v566 = vmax.f32 %v438, 1e-06
    %v567 = vmax.f32 %v439, 1e-06
    %v568 = vmax.f32 %v440, 1e-06
    %v569 = vmax.f32 %v441, 1e-06
    %v570 = vmax.f32 %v442, 1e-06
    %v571 = vmax.f32 %v443, 1e-06
    %v572 = vmax.f32 %v444, 1e-06
    %v573 = vmax.f32 %v445, 1e-06
    %v574 = vmax.f32 %v446, 1e-06
    %v575 = vmax.f32 %v447, 1e-06
    %v576 = vmax.f32 %v448, 1e-06
    %v577 = vmax.f32 %v449, 1e-06
    %v578 = vmax.f32 %v450, 1e-06
    %v579 = vmax.f32 %v451, 1e-06
    %v580 = vmax.f32 %v452, 1e-06
    %v581 = vmax.f32 %v453, 1e-06
    %v582 = vmax.f32 %v454, 1e-06
    %v583 = vmax.f32 %v455, 1e-06
    %v584 = vmax.f32 %v456, 1e-06
    %v585 = vmax.f32 %v457, 1e-06
    %v586 = vmax.f32 %v458, 1e-06
    %v587 = vmax.f32 %v459, 1e-06
    %v588 = vmax.f32 %v460, 1e-06
    %v589 = vmax.f32 %v461, 1e-06
    %v590 = vmax.f32 %v462, 1e-06
    %v591 = vmax.f32 %v463, 1e-06
    %v592 = vmax.f32 %v464, 1e-06
    %v593 = vmax.f32 %v465, 1e-06
    %v594 = vmax.f32 %v466, 1e-06
    %v595 = vmax.f32 %v467, 1e-06
    %v596 = vmax.f32 %v468, 1e-06
    %v597 = vmax.f32 %v469, 1e-06
    %v598 = vmax.f32 %v470, 1e-06
    %v599 = vsub.f32 %v215, %v471
    %v600 = vsub.f32 %v216, %v472
    %v601 = vsub.f32 %v217, %v473
    %v602 = vsub.f32 %v218, %v474
    %v603 = vsub.f32 %v219, %v475
    %v604 = vsub.f32 %v220, %v476
    %v605 = vsub.f32 %v221, %v477
    %v606 = vsub.f32 %v222, %v478
    %v607 = vsub.f32 %v223, %v479
    %v608 = vsub.f32 %v224, %v480
    %v609 = vsub.f32 %v225, %v481
    %v610 = vsub.f32 %v226, %v482
    %v611 = vsub.f32 %v227, %v483
    %v612 = vsub.f32 %v228, %v484
    %v613 = vsub.f32 %v229, %v485
    %v614 = vsub.f32 %v230, %v486
    %v615 = vsub.f32 %v231, %v487
    %v616 = vsub.f32 %v232, %v488
    %v617 = vsub.f32 %v233, %v489
    %v618 = vsub.f32 %v234, %v490
    %v619 = vsub.f32 %v235, %v491
    %v620 = vsub.f32 %v236, %v492
    %v621 = vsub.f32 %v237, %v493
    %v622 = vsub.f32 %v238, %v494
    %v623 = vsub.f32 %v239, %v495
    %v624 = vsub.f32 %v240, %v496
    %v625 = vsub.f32 %v241, %v497
    %v626 = vsub.f32 %v242, %v498
    %v627 = vsub.f32 %v243, %v499
    %v628 = vsub.f32 %v244, %v500
    %v629 = vsub.f32 %v245, %v501
    %v630 = vsub.f32 %v246, %v502
    %v631 = vsub.f32 %v247, %v503
    %v632 = vsub.f32 %v248, %v504
    %v633 = vsub.f32 %v249, %v505
    %v634 = vsub.f32 %v250, %v506
    %v635 = vsub.f32 %v251, %v507
    %v636 = vsub.f32 %v252, %v508
    %v637 = vsub.f32 %v253, %v509
    %v638 = vsub.f32 %v254, %v510
    %v639 = vsub.f32 %v255, %v511
    %v640 = vsub.f32 %v256, %v512
    %v641 = vsub.f32 %v257, %v513
    %v642 = vsub.f32 %v258, %v514
    %v643 = vsub.f32 %v259, %v515
    %v644 = vsub.f32 %v260, %v516
    %v645 = vsub.f32 %v261, %v517
    %v646 = vsub.f32 %v262, %v518
    %v647 = vsub.f32 %v263, %v519
    %v648 = vsub.f32 %v264, %v520
    %v649 = vsub.f32 %v265, %v521
    %v650 = vsub.f32 %v266, %v522
    %v651 = vsub.f32 %v267, %v523
    %v652 = vsub.f32 %v268, %v524
    %v653 = vsub.f32 %v269, %v525
    %v654 = vsub.f32 %v270, %v526
    %v655 = vsub.f32 %v271, %v527
    %v656 = vsub.f32 %v272, %v528
    %v657 = vsub.f32 %v273, %v529
    %v658 = vsub.f32 %v274, %v530
    %v659 = vsub.f32 %v275, %v531
    %v660 = vsub.f32 %v276, %v532
    %v661 = vsub.f32 %v277, %v533
    %v662 = vsub.f32 %v278, %v534
    %v663 = vsub.f32 %v279, %v535
    %v664 = vsub.f32 %v280, %v536
    %v665 = vsub.f32 %v281, %v537
    %v666 = vsub.f32 %v282, %v538
    %v667 = vsub.f32 %v283, %v539
    %v668 = vsub.f32 %v284, %v540
    %v669 = vsub.f32 %v285, %v541
    %v670 = vsub.f32 %v286, %v542
    %v671 = vsub.f32 %v287, %v543
    %v672 = vsub.f32 %v288, %v544
    %v673 = vsub.f32 %v289, %v545
    %v674 = vsub.f32 %v290, %v546
    %v675 = vsub.f32 %v291, %v547
    %v676 = vsub.f32 %v292, %v548
    %v677 = vsub.f32 %v293, %v549
    %v678 = vsub.f32 %v294, %v550
    %v679 = vsub.f32 %v295, %v551
    %v680 = vsub.f32 %v296, %v552
    %v681 = vsub.f32 %v297, %v553
    %v682 = vsub.f32 %v298, %v554
    %v683 = vsub.f32 %v299, %v555
    %v684 = vsub.f32 %v300, %v556
    %v685 = vsub.f32 %v301, %v557
    %v686 = vsub.f32 %v302, %v558
    %v687 = vsub.f32 %v303, %v559
    %v688 = vsub.f32 %v304, %v560
    %v689 = vsub.f32 %v305, %v561
    %v690 = vsub.f32 %v306, %v562
    %v691 = vsub.f32 %v307, %v563
    %v692 = vsub.f32 %v308, %v564
    %v693 = vsub.f32 %v309, %v565
    %v694 = vsub.f32 %v310, %v566
    %v695 = vsub.f32 %v311, %v567
    %v696 = vsub.f32 %v312, %v568
    %v697 = vsub.f32 %v313, %v569
    %v698 = vsub.f32 %v314, %v570
    %v699 = vsub.f32 %v315, %v571
    %v700 = vsub.f32 %v316, %v572
    %v701 = vsub.f32 %v317, %v573
    %v702 = vsub.f32 %v318, %v574
    %v703 = vsub.f32 %v319, %v575
    %v704 = vsub.f32 %v320, %v576
    %v705 = vsub.f32 %v321, %v577
    %v706 = vsub.f32 %v322, %v578
    %v707 = vsub.f32 %v323, %v579
    %v708 = vsub.f32 %v324, %v580
    %v709 = vsub.f32 %v325, %v581
    %v710 = vsub.f32 %v326, %v582
    %v711 = vsub.f32 %v327, %v583
    %v712 = vsub.f32 %v328, %v584
    %v713 = vsub.f32 %v329, %v585
    %v714 = vsub.f32 %v330, %v586
    %v715 = vsub.f32 %v331, %v587
    %v716 = vsub.f32 %v332, %v588
    %v717 = vsub.f32 %v333, %v589
    %v718 = vsub.f32 %v334, %v590
    %v719 = vsub.f32 %v335, %v591
    %v720 = vsub.f32 %v336, %v592
    %v721 = vsub.f32 %v337, %v593
    %v722 = vsub.f32 %v338, %v594
    %v723 = vsub.f32 %v339, %v595
    %v724 = vsub.f32 %v340, %v596
    %v725 = vsub.f32 %v341, %v597
    %v726 = vsub.f32 %v342, %v598
    %v727 = vand.u32 2147483647, %v599
    %v728 = vand.u32 2147483647, %v600
    %v729 = vand.u32 2147483647, %v601
    %v730 = vand.u32 2147483647, %v602
    %v731 = vand.u32 2147483647, %v603
    %v732 = vand.u32 2147483647, %v604
    %v733 = vand.u32 2147483647, %v605
    %v734 = vand.u32 2147483647, %v606
    %v735 = vand.u32 2147483647, %v607
    %v736 = vand.u32 2147483647, %v608
    %v737 = vand.u32 2147483647, %v609
    %v738 = vand.u32 2147483647, %v610
    %v739 = vand.u32 2147483647, %v611
    %v740 = vand.u32 2147483647, %v612
    %v741 = vand.u32 2147483647, %v613
    %v742 = vand.u32 2147483647, %v614
    %v743 = vand.u32 2147483647, %v615
    %v744 = vand.u32 2147483647, %v616
    %v745 = vand.u32 2147483647, %v617
    %v746 = vand.u32 2147483647, %v618
    %v747 = vand.u32 2147483647, %v619
    %v748 = vand.u32 2147483647, %v620
    %v749 = vand.u32 2147483647, %v621
    %v750 = vand.u32 2147483647, %v622
    %v751 = vand.u32 2147483647, %v623
    %v752 = vand.u32 2147483647, %v624
    %v753 = vand.u32 2147483647, %v625
    %v754 = vand.u32 2147483647, %v626
    %v755 = vand.u32 2147483647, %v627
    %v756 = vand.u32 2147483647, %v628
    %v757 = vand.u32 2147483647, %v629
    %v758 = vand.u32 2147483647, %v630
    %v759 = vand.u32 2147483647, %v631
    %v760 = vand.u32 2147483647, %v632
    %v761 = vand.u32 2147483647, %v633
    %v762 = vand.u32 2147483647, %v634
    %v763 = vand.u32 2147483647, %v635
    %v764 = vand.u32 2147483647, %v636
    %v765 = vand.u32 2147483647, %v637
    %v766 = vand.u32 2147483647, %v638
    %v767 = vand.u32 2147483647, %v639
    %v768 = vand.u32 2147483647, %v640
    %v769 = vand.u32 2147483647, %v641
    %v770 = vand.u32 2147483647, %v642
    %v771 = vand.u32 2147483647, %v643
    %v772 = vand.u32 2147483647, %v644
    %v773 = vand.u32 2147483647, %v645
    %v774 = vand.u32 2147483647, %v646
    %v775 = vand.u32 2147483647, %v647
    %v776 = vand.u32 2147483647, %v648
    %v777 = vand.u32 2147483647, %v649
    %v778 = vand.u32 2147483647, %v650
    %v779 = vand.u32 2147483647, %v651
    %v780 = vand.u32 2147483647, %v652
    %v781 = vand.u32 2147483647, %v653
    %v782 = vand.u32 2147483647, %v654
    %v783 = vand.u32 2147483647, %v655
    %v784 = vand.u32 2147483647, %v656
    %v785 = vand.u32 2147483647, %v657
    %v786 = vand.u32 2147483647, %v658
    %v787 = vand.u32 2147483647, %v659
    %v788 = vand.u32 2147483647, %v660
    %v789 = vand.u32 2147483647, %v661
    %v790 = vand.u32 2147483647, %v662
    %v791 = vand.u32 2147483647, %v663
    %v792 = vand.u32 2147483647, %v664
    %v793 = vand.u32 2147483647, %v665
    %v794 = vand.u32 2147483647, %v666
    %v795 = vand.u32 2147483647, %v667
    %v796 = vand.u32 2147483647, %v668
    %v797 = vand.u32 2147483647, %v669
    %v798 = vand.u32 2147483647, %v670
    %v799 = vand.u32 2147483647, %v671
    %v800 = vand.u32 2147483647, %v672
    %v801 = vand.u32 2147483647, %v673
    %v802 = vand.u32 2147483647, %v674
    %v803 = vand.u32 2147483647, %v675
    %v804 = vand.u32 2147483647, %v676
    %v805 = vand.u32 2147483647, %v677
    %v806 = vand.u32 2147483647, %v678
    %v807 = vand.u32 2147483647, %v679
    %v808 = vand.u32 2147483647, %v680
    %v809 = vand.u32 2147483647, %v681
    %v810 = vand.u32 2147483647, %v682
    %v811 = vand.u32 2147483647, %v683
    %v812 = vand.u32 2147483647, %v684
    %v813 = vand.u32 2147483647, %v685
    %v814 = vand.u32 2147483647, %v686
    %v815 = vand.u32 2147483647, %v687
    %v816 = vand.u32 2147483647, %v688
    %v817 = vand.u32 2147483647, %v689
    %v818 = vand.u32 2147483647, %v690
    %v819 = vand.u32 2147483647, %v691
    %v820 = vand.u32 2147483647, %v692
    %v821 = vand.u32 2147483647, %v693
    %v822 = vand.u32 2147483647, %v694
    %v823 = vand.u32 2147483647, %v695
    %v824 = vand.u32 2147483647, %v696
    %v825 = vand.u32 2147483647, %v697
    %v826 = vand.u32 2147483647, %v698
    %v827 = vand.u32 2147483647, %v699
    %v828 = vand.u32 2147483647, %v700
    %v829 = vand.u32 2147483647, %v701
    %v830 = vand.u32 2147483647, %v702
    %v831 = vand.u32 2147483647, %v703
    %v832 = vand.u32 2147483647, %v704
    %v833 = vand.u32 2147483647, %v705
    %v834 = vand.u32 2147483647, %v706
    %v835 = vand.u32 2147483647, %v707
    %v836 = vand.u32 2147483647, %v708
    %v837 = vand.u32 2147483647, %v709
    %v838 = vand.u32 2147483647, %v710
    %v839 = vand.u32 2147483647, %v711
    %v840 = vand.u32 2147483647, %v712
    %v841 = vand.u32 2147483647, %v713
    %v842 = vand.u32 2147483647, %v714
    %v843 = vand.u32 2147483647, %v715
    %v844 = vand.u32 2147483647, %v716
    %v845 = vand.u32 2147483647, %v717
    %v846 = vand.u32 2147483647, %v718
    %v847 = vand.u32 2147483647, %v719
    %v848 = vand.u32 2147483647, %v720
    %v849 = vand.u32 2147483647, %v721
    %v850 = vand.u32 2147483647, %v722
    %v851 = vand.u32 2147483647, %v723
    %v852 = vand.u32 2147483647, %v724
    %v853 = vand.u32 2147483647, %v725
    %v854 = vand.u32 2147483647, %v726
    %v855 = vld [vmem:[#allocation2] sm:$0x3]
    %v856 = vadd.f32 %v727, %v729
    %v857 = vadd.f32 %v856, %v731
    %v858 = vadd.f32 %v857, %v733
    %v859 = vadd.f32 %v858, %v735
    %v860 = vadd.f32 %v859, %v737
    %v861 = vadd.f32 %v860, %v739
    %v862 = vadd.f32 %v861, %v741
    %v863 = vadd.f32 %v862, %v743
    %v864 = vadd.f32 %v863, %v745
    %v865 = vadd.f32 %v864, %v747
    %v866 = vadd.f32 %v865, %v749
    %v867 = vadd.f32 %v866, %v751
    %v868 = vadd.f32 %v867, %v753
    %v869 = vadd.f32 %v868, %v755
    %v870 = vadd.f32 %v869, %v757
    %v871 = vadd.f32 %v870, %v759
    %v872 = vadd.f32 %v871, %v761
    %v873 = vadd.f32 %v872, %v763
    %v874 = vadd.f32 %v873, %v765
    %v875 = vadd.f32 %v874, %v767
    %v876 = vadd.f32 %v875, %v769
    %v877 = vadd.f32 %v876, %v771
    %v878 = vadd.f32 %v877, %v773
    %v879 = vadd.f32 %v878, %v775
    %v880 = vadd.f32 %v879, %v777
    %v881 = vadd.f32 %v880, %v779
    %v882 = vadd.f32 %v881, %v781
    %v883 = vadd.f32 %v882, %v783
    %v884 = vadd.f32 %v883, %v785
    %v885 = vadd.f32 %v884, %v787
    %v886 = vadd.f32 %v885, %v789
    %v887 = vadd.f32 %v886, %v791
    %v888 = vadd.f32 %v887, %v793
    %v889 = vadd.f32 %v888, %v795
    %v890 = vadd.f32 %v889, %v797
    %v891 = vadd.f32 %v890, %v799
    %v892 = vadd.f32 %v891, %v801
    %v893 = vadd.f32 %v892, %v803
    %v894 = vadd.f32 %v893, %v805
    %v895 = vadd.f32 %v894, %v807
    %v896 = vadd.f32 %v895, %v809
    %v897 = vadd.f32 %v896, %v811
    %v898 = vadd.f32 %v897, %v813
    %v899 = vadd.f32 %v898, %v815
    %v900 = vadd.f32 %v899, %v817
    %v901 = vadd.f32 %v900, %v819
    %v902 = vadd.f32 %v901, %v821
    %v903 = vadd.f32 %v902, %v823
    %v904 = vadd.f32 %v903, %v825
    %v905 = vadd.f32 %v904, %v827
    %v906 = vadd.f32 %v905, %v829
    %v907 = vadd.f32 %v906, %v831
    %v908 = vadd.f32 %v907, %v833
    %v909 = vadd.f32 %v908, %v835
    %v910 = vadd.f32 %v909, %v837
    %v911 = vadd.f32 %v910, %v839
    %v912 = vadd.f32 %v911, %v841
    %v913 = vadd.f32 %v912, %v843
    %v914 = vadd.f32 %v913, %v845
    %v915 = vadd.f32 %v914, %v847
    %v916 = vadd.f32 %v915, %v849
    %v917 = vadd.f32 %v916, %v851
    %v918 = vadd.f32 %v917, %v853
    %v919 = vrot.slane %v918, 4
    %v920 = vadd.f32 %v918, %v919
    %v921 = vrot.slane %v920, 2
    %v922 = vadd.f32 %v920, %v921
    %v923 = vrot.slane %v922, 1
    %v924 = vadd.f32 %v922, %v923
    %v925 = vadd.f32 %v728, %v730
    %v926 = vadd.f32 %v925, %v732
    %v927 = vadd.f32 %v926, %v734
    %v928 = vadd.f32 %v927, %v736
    %v929 = vadd.f32 %v928, %v738
    %v930 = vadd.f32 %v929, %v740
    %v931 = vadd.f32 %v930, %v742
    %v932 = vadd.f32 %v931, %v744
    %v933 = vadd.f32 %v932, %v746
    %v934 = vadd.f32 %v933, %v748
    %v935 = vadd.f32 %v934, %v750
    %v936 = vadd.f32 %v935, %v752
    %v937 = vadd.f32 %v936, %v754
    %v938 = vadd.f32 %v937, %v756
    %v939 = vadd.f32 %v938, %v758
    %v940 = vadd.f32 %v939, %v760
    %v941 = vadd.f32 %v940, %v762
    %v942 = vadd.f32 %v941, %v764
    %v943 = vadd.f32 %v942, %v766
    %v944 = vadd.f32 %v943, %v768
    %v945 = vadd.f32 %v944, %v770
    %v946 = vadd.f32 %v945, %v772
    %v947 = vadd.f32 %v946, %v774
    %v948 = vadd.f32 %v947, %v776
    %v949 = vadd.f32 %v948, %v778
    %v950 = vadd.f32 %v949, %v780
    %v951 = vadd.f32 %v950, %v782
    %v952 = vadd.f32 %v951, %v784
    %v953 = vadd.f32 %v952, %v786
    %v954 = vadd.f32 %v953, %v788
    %v955 = vadd.f32 %v954, %v790
    %v956 = vadd.f32 %v955, %v792
    %v957 = vadd.f32 %v956, %v794
    %v958 = vadd.f32 %v957, %v796
    %v959 = vadd.f32 %v958, %v798
    %v960 = vadd.f32 %v959, %v800
    %v961 = vadd.f32 %v960, %v802
    %v962 = vadd.f32 %v961, %v804
    %v963 = vadd.f32 %v962, %v806
    %v964 = vadd.f32 %v963, %v808
    %v965 = vadd.f32 %v964, %v810
    %v966 = vadd.f32 %v965, %v812
    %v967 = vadd.f32 %v966, %v814
    %v968 = vadd.f32 %v967, %v816
    %v969 = vadd.f32 %v968, %v818
    %v970 = vadd.f32 %v969, %v820
    %v971 = vadd.f32 %v970, %v822
    %v972 = vadd.f32 %v971, %v824
    %v973 = vadd.f32 %v972, %v826
    %v974 = vadd.f32 %v973, %v828
    %v975 = vadd.f32 %v974, %v830
    %v976 = vadd.f32 %v975, %v832
    %v977 = vadd.f32 %v976, %v834
    %v978 = vadd.f32 %v977, %v836
    %v979 = vadd.f32 %v978, %v838
    %v980 = vadd.f32 %v979, %v840
    %v981 = vadd.f32 %v980, %v842
    %v982 = vadd.f32 %v981, %v844
    %v983 = vadd.f32 %v982, %v846
    %v984 = vadd.f32 %v983, %v848
    %v985 = vadd.f32 %v984, %v850
    %v986 = vadd.f32 %v985, %v852
    %v987 = vadd.f32 %v986, %v854
    %v988 = vrot.slane %v987, 4
    %v989 = vadd.f32 %v987, %v988
    %v990 = vrot.slane %v989, 2
    %v991 = vadd.f32 %v989, %v990
    %v992 = vrot.slane %v991, 1
    %v993 = vadd.f32 %v991, %v992
    %v996 = vcombine.low %v924, %v993
    %v998 = vunpack.c.l.s4 1966171168
    %v999 = vunpack.c.0.s8 %v998
    %v1000 = vlaneseq
    %v1001 = vshrl.u32 %v1000, 7
    %v1002 = vsub.s32 %v999, %v1001
    %v1003 = vrot.slane %v996, %v1002
    %v1005 = vunpack.c.l.s4 1966171168
    %v1006 = vunpack.c.0.s8 %v1005
    %v1007 = vlaneseq
    %v1008 = vshrl.u32 %v1007, 7
    %v1009 = vsub.s32 %v1006, %v1008
    %v1010 = vrot.slane %v1003, %v1009
    %v1012 = vadd.f32 %v855, %v1010
    %v1013 = vlaneseq
    %vm1014 = vcmp.ge.s32.totalorder %v1013, 0
    %vm1015 = vcmp.lt.s32.totalorder %v1013, 256
    %vm1016 = vmand %vm1014, %vm1015
    %1017 = vst.msk [vmem:[#allocation2] sm:$0x3] %vm1016, %v1012
    %p1018 = scmp.eq.s32.totalorder 0, 0
    %p1019 = pnand %p1018, %p77
    %p1020 = pneg %p1019
    // Predicated region
    $region38: #{tpu_custom_call.1} parent=1 // pred_check
      _
    $region39: #{tpu_custom_call.1} parent=1 // pred_check_branch
      %1022 = sbr.rel (%p1019) target = $region41
    $region40: #{tpu_custom_call.1} parent=1 // pred_region
      %v1023 = vpack.c.bf16 %v601, %v599
      %v1024 = vpack.c.bf16 %v602, %v600
      %v1025 = vpack.c.bf16 %v605, %v603
      %v1026 = vpack.c.bf16 %v606, %v604
      %v1027 = vpack.c.bf16 %v609, %v607
      %v1028 = vpack.c.bf16 %v610, %v608
      %v1029 = vpack.c.bf16 %v613, %v611
      %v1030 = vpack.c.bf16 %v614, %v612
      %v1031 = vpack.c.bf16 %v617, %v615
      %v1032 = vpack.c.bf16 %v618, %v616
      %v1033 = vpack.c.bf16 %v621, %v619
      %v1034 = vpack.c.bf16 %v622, %v620
      %v1035 = vpack.c.bf16 %v625, %v623
      %v1036 = vpack.c.bf16 %v626, %v624
      %v1037 = vpack.c.bf16 %v629, %v627
      %v1038 = vpack.c.bf16 %v630, %v628
      %v1039 = vld [vmem:[#allocation8] sm:$0xff]
      %v1040 = vld [vmem:[#allocation8 + $0x8] sm:$0xff]
      %v1041 = vld [vmem:[#allocation8 + $0x10] sm:$0xff]
      %v1042 = vld [vmem:[#allocation8 + $0x18] sm:$0xff]
      %v1043 = vld [vmem:[#allocation8 + $0x20] sm:$0xff]
      %v1044 = vld [vmem:[#allocation8 + $0x28] sm:$0xff]
      %v1045 = vld [vmem:[#allocation8 + $0x30] sm:$0xff]
      %v1046 = vld [vmem:[#allocation8 + $0x38] sm:$0xff]
      %v1047 = vpack.c.bf16 %v1040, %v1039
      %v1048 = vpack.c.bf16 %v1042, %v1041
      %v1049 = vpack.c.bf16 %v1044, %v1043
      %v1050 = vpack.c.bf16 %v1046, %v1045
      %1051 = vmatprep.subr.bf16.mxu0 %v1024
      %1052 = vmatpush1.bf16.msra.mxu0 %v1023
      %1053 = vmatprep.subr.bf16.mxu0 %v1026
      %1054 = vmatpush1.bf16.msra.mxu0 %v1025
      %1055 = vmatprep.subr.bf16.mxu0 %v1028
      %1056 = vmatpush1.bf16.msra.mxu0 %v1027
      %1057 = vmatprep.subr.bf16.mxu0 %v1030
      %1058 = vmatpush1.bf16.msra.mxu0 %v1029
      %1059 = vmatprep.subr.bf16.mxu0 %v1032
      %1060 = vmatpush1.bf16.msra.mxu0 %v1031
      %1061 = vmatprep.subr.bf16.mxu0 %v1034
      %1062 = vmatpush1.bf16.msra.mxu0 %v1033
      %1063 = vmatprep.subr.bf16.mxu0 %v1036
      %1064 = vmatpush1.bf16.msra.mxu0 %v1035
      %1065 = vmatprep.subr.bf16.mxu0 %v1038
      %1066 = vmatpush1.bf16.msra.mxu0 %v1037
      %1067 = vmatprep.subr.bf16.mxu0 0
      %1068 = vmatpush1.bf16.msra.mxu0 0
      %1069 = vmatprep.subr.bf16.mxu0 0
      %1070 = vmatpush1.bf16.msra.mxu0 0
      %1071 = vmatprep.subr.bf16.mxu0 0
      %1072 = vmatpush1.bf16.msra.mxu0 0
      %1073 = vmatprep.subr.bf16.mxu0 0
      %1074 = vmatpush1.bf16.msra.mxu0 0
      %1075 = vmatprep.subr.bf16.mxu0 0
      %1076 = vmatpush1.bf16.msra.mxu0 0
      %1077 = vmatprep.subr.bf16.mxu0 0
      %1078 = vmatpush1.bf16.msra.mxu0 0
      %1079 = vmatprep.subr.bf16.mxu0 0
      %1080 = vmatpush1.bf16.msra.mxu0 0
      %1081 = vmatprep.subr.bf16.mxu0 0
      %1082 = vmatpush1.bf16.msra.mxu0 0
      %1083 = vmatprep.mubr.bf16.mxu0 0
      %1084 = vmatmul.mubr.bf16.gmra.mrb[0].mxu0 %v1047
      %v1085 = vpop.f32.mrb[0].mxu0
      %v1086 = vadd.f32 0.0, %v1085
      %v1087 = vpop.f32.mrb[0].mxu0
      %v1088 = vadd.f32 0.0, %v1087
      %v1089 = vpop.f32.mrb[0].mxu0
      %v1090 = vadd.f32 0.0, %v1089
      %v1091 = vpop.f32.mrb[0].mxu0
      %v1092 = vadd.f32 0.0, %v1091
      %1093 = vmatprep.mubr.bf16.mxu0 0
      %1094 = vmatmul.mubr.bf16.gmra.mrb[0].mxu0 %v1048
      %v1095 = vpop.f32.mrb[0].mxu0
      %v1096 = vadd.f32 0.0, %v1095
      %v1097 = vpop.f32.mrb[0].mxu0
      %v1098 = vadd.f32 0.0, %v1097
      %v1099 = vpop.f32.mrb[0].mxu0
      %v1100 = vadd.f32 0.0, %v1099
      %v1101 = vpop.f32.mrb[0].mxu0
      %v1102 = vadd.f32 0.0, %v1101
      %1103 = vmatprep.mubr.bf16.mxu0 0
      %1104 = vmatmul.mubr.bf16.gmra.mrb[0].mxu0 %v1049
      %v1105 = vpop.f32.mrb[0].mxu0
      %v1106 = vadd.f32 0.0, %v1105
      %v1107 = vpop.f32.mrb[0].mxu0
      %v1108 = vadd.f32 0.0, %v1107
      %v1109 = vpop.f32.mrb[0].mxu0
      %v1110 = vadd.f32 0.0, %v1109
      %v1111 = vpop.f32.mrb[0].mxu0
      %v1112 = vadd.f32 0.0, %v1111
      %1113 = vmatprep.mubr.bf16.mxu0 0
      %1114 = vmatmul.mubr.bf16.gmra.mrb[0].mxu0 %v1050
      %v1115 = vpop.f32.mrb[0].mxu0
      %v1116 = vadd.f32 0.0, %v1115
      %v1117 = vpop.f32.mrb[0].mxu0
      %v1118 = vadd.f32 0.0, %v1117
      %v1119 = vpop.f32.mrb[0].mxu0
      %v1120 = vadd.f32 0.0, %v1119
      %v1121 = vpop.f32.mrb[0].mxu0
      %v1122 = vadd.f32 0.0, %v1121
      %1123 = vdwg.mxu0
      %v1124 = vand.u32 2147483647, %v1086
      %v1125 = vand.u32 2147483647, %v1088
      %v1126 = vand.u32 2147483647, %v1090
      %v1127 = vand.u32 2147483647, %v1092
      %v1128 = vand.u32 2147483647, %v1096
      %v1129 = vand.u32 2147483647, %v1098
      %v1130 = vand.u32 2147483647, %v1100
      %v1131 = vand.u32 2147483647, %v1102
      %v1132 = vand.u32 2147483647, %v1106
      %v1133 = vand.u32 2147483647, %v1108
      %v1134 = vand.u32 2147483647, %v1110
      %v1135 = vand.u32 2147483647, %v1112
      %v1136 = vand.u32 2147483647, %v1116
      %v1137 = vand.u32 2147483647, %v1118
      %v1138 = vand.u32 2147483647, %v1120
      %v1139 = vand.u32 2147483647, %v1122
      %v1140 = vadd.f32 %v1124, %v1125
      %v1141 = vadd.f32 %v1140, %v1126
      %v1142 = vadd.f32 %v1141, %v1127
      %v1143 = vadd.f32 %v1142, %v1128
      %v1144 = vadd.f32 %v1143, %v1129
      %v1145 = vadd.f32 %v1144, %v1130
      %v1146 = vadd.f32 %v1145, %v1131
      %v1147 = vadd.f32 %v1146, %v1132
      %v1148 = vadd.f32 %v1147, %v1133
      %v1149 = vadd.f32 %v1148, %v1134
      %v1150 = vadd.f32 %v1149, %v1135
      %v1151 = vadd.f32 %v1150, %v1136
      %v1152 = vadd.f32 %v1151, %v1137
      %v1153 = vadd.f32 %v1152, %v1138
      %v1154 = vadd.f32 %v1153, %v1139
      %1155 = vadd.xlane.f32.xlu0 %v1154
      %v1156 = vpop.xlane.xlu0 %1155
      %v1157 = vrot.slane %v1156, 4
      %v1158 = vadd.f32 %v1156, %v1157
      %v1159 = vrot.slane %v1158, 2
      %v1160 = vadd.f32 %v1158, %v1159
      %v1161 = vrot.slane %v1160, 1
      %v1162 = vadd.f32 %v1160, %v1161
      %s1163 = vtos %v1162
      %v1164 = vrcp.pop 16384.0
      %s1165 = vtos %v1164
      %s1166 = smul.f32 %s1163, %s1165
      %v1167 = vstv %s1166
      %1168 = vst [vmem:[#allocation9 + $0x1] sm:$0x1] %v1167
      %v1169 = vld [vmem:[%s3] sm:$0x3]
      %v1170 = vld [vmem:[%s4] sm:$0x3]
      %v1171 = vsub.f32 %v1169, %v1170
      %v1172 = vmul.f32 %v1171, %v1171
      %vm1173 = vcmask 74752
      %v1174 = vsel %vm1173, %v1172, 0.0
      %1175 = vadd.xlane.f32.xlu0 %v1174
      %v1176 = vpop.xlane.xlu0 %1175
      %v1177 = vrot.slane %v1176, 4
      %v1178 = vadd.f32 %v1176, %v1177
      %v1179 = vrot.slane %v1178, 2
      %v1180 = vadd.f32 %v1178, %v1179
      %v1181 = vrot.slane %v1180, 1
      %v1182 = vadd.f32 %v1180, %v1181
      %s1183 = vtos %v1182
      %v1184 = vrcp.pop 20.0
      %s1185 = vtos %v1184
      %s1186 = smul.f32 %s1183, %s1185
      %v1187 = vstv %s1186
      %1188 = vst [vmem:[#allocation9 + $0x2] sm:$0x1] %v1187
    $region41: #{tpu_custom_call.1} parent=1 // pred_fallthru
      _
    // Predicated region
    $region42: #{tpu_custom_call.1} parent=1 // pred_check
      %p1189 = pneg %p77
    $region43: #{tpu_custom_call.1} parent=1 // pred_check_branch
      %1191 = sbr.rel (%p1189) target = $region45
    $region44: #{tpu_custom_call.1} parent=1 // pred_region
      %v1192 = vld [vmem:[#allocation2] sm:$0x3]
      %v1194 = vlaneseq
      %v1195 = vshrl.u32 %v1194, 7
      %v1196 = vsub.s32 0, %v1195
      %v1197 = vrot.slane %v1192, %v1196
      %v1198 = vlaneseq
      %v1199 = vshrl.u32 %v1198, 7
      %v1200 = vsub.s32 1, %v1199
      %v1201 = vrot.slane %v1192, %v1200
      %vm1204 = vcmask 1040384
      %v1205 = vsel %vm1204, %v1197, 0.0
      %v1206 = vsel %vm1204, %v1201, 0.0
      %v1207 = vadd.f32 %v1205, %v1206
      %1208 = vadd.xlane.f32.xlu0 %v1207
      %v1209 = vpop.xlane.xlu0 %1208
      %v1210 = vrot.slane %v1209, 4
      %v1211 = vadd.f32 %v1209, %v1210
      %v1212 = vrot.slane %v1211, 2
      %v1213 = vadd.f32 %v1211, %v1212
      %v1214 = vrot.slane %v1213, 1
      %v1215 = vadd.f32 %v1213, %v1214
      %s1216 = vtos %v1215
      %v1217 = vstv %s1216
      %1218 = vst [vmem:[#allocation9] sm:$0x1] %v1217
    $region45: #{tpu_custom_call.1} parent=1 // pred_fallthru
      _
    // Predicated region
    $region46: #{tpu_custom_call.1} parent=1 // pred_check
      _
    $region47: #{tpu_custom_call.1} parent=1 // pred_check_branch
      %1220 = sbr.rel (0) target = $region49
    $region48: #{tpu_custom_call.1} parent=1 // pred_region
      %s1222 = ssub.s32 128, 128
      %1223 = vsyncadd [#allocation5], %s1222
      %s1225 = sshll.u32 [#allocation9], 4
      %s1226 = int_to_ptr.vmem [resolvable:$true] %s1225
      %1228 = dma.vmem_to_hbm [thread:$0]  %s1226, 128, %s5, [#allocation5]
    $region49: #{tpu_custom_call.1} parent=1 // pred_fallthru
      _
    // Predicated region
    $region50: #{tpu_custom_call.1} parent=1 // pred_check
      _
    $region51: #{tpu_custom_call.1} parent=1 // pred_check_branch
      %1230 = sbr.rel (0) target = $region53
    $region52: #{tpu_custom_call.1} parent=1 // pred_region
      %1231 = dma.done [#allocation5], 128
    $region53: #{tpu_custom_call.1} parent=1 // pred_fallthru
      _
    %1232 = vsyncpa [#allocation4], 1
    %1233 = vsyncpa [#allocation7], 1
    %1234 = vsyncpa [#allocation5], 1

</llo_original>
